<compile_context>
chip_gen: v7x
topology: tpu7x:2x2x1
jax: 0.10.0
libtpu: 0.0.40
codegen_flags: <defaults>
</compile_context>

<pallas_src>
import numpy as np
import jax
import jax.numpy as jnp
from jax.experimental import pallas as pl
from jax.experimental.pallas import tpu as pltpu

# ----------------------------- configuration --------------------------------
INPLANES = 8          # residual requires inplanes == planes * expansion (=2)
PLANES = 4
WIDTH = PLANES        # base_width = 64 -> width = planes
GROUPS = 1            # AxialBlock_wopos default (folding assumes groups == 1)
N, H, W = 2, 16, 16
BN_EPS = 1e-5

# bias slab row offsets (each slot is 8 rows, pre-broadcast to 256 lanes)
B_B1, B_QB_H, B_OB_H, B_QB_W, B_OB_W, B_B2 = 0, 8, 16, 24, 32, 40


# ------------------------------ fused Pallas kernel --------------------------
def _make_fused_kernel(hh, ww, cin, width, cout):
    assert hh == ww
    s = hh * ww
    ks = hh                       # axial sequence length (= #keys per query)
    gq = width // 2               # q / k channels (groups == 1)
    gv = width                    # v channels
    nkv = gq + gv                 # 6 k/v channels
    rep = nkv * ks                # 96 rows of 16x-replicated k/v projection
    wall_rows = rep + 8           # + q rows (at offset `rep`), padded to x8
    # weight slab row offsets
    OFF_WD, OFF_WU, OFF_WALL_H = 0, 8, 16
    OFF_WALL_W = OFF_WALL_H + wall_rows

    def kernel(x_ref, et96_ref, er96_ref, w_ref, b_ref, o_ref):
        f32 = jnp.float32
        x = x_ref[0]                                   # (cin, s), p = h*W + w
        et = et96_ref[pl.ds(0, ks), :]                 # (ks, s): [w, p] = [p%W == w]
        er = er96_ref[pl.ds(0, ks), :]                 # (ks, s): [h, p] = [p//W == h]

        def axial(h_cm, w_off, qb_off, ob_off, s1_ref, s2):
            # One fused projection: rows [0:rep] are the 6 k/v channels each
            # replicated 16x (replication folded into the packed weights),
            # rows [rep:rep+gq] are q.  All lane-dense (width, s) -> (., s).
            wall = w_ref[pl.ds(w_off, wall_rows), pl.ds(0, width)]
            allp = jnp.dot(wall, h_cm, preferred_element_type=f32)      # (rep+8, s)
            q = allp[rep:rep + gq, :] + b_ref[pl.ds(qb_off, gq), :]     # (gq, s)

            # expv[(c, i), p] = value of channel c at the i-th key of query p's
            # sequence.  Built with two tiny matmuls against constant 0/1
            # selectors (exact): no reshapes, no transposes, no gathers.
            rows = allp[:rep, :] * s1_ref[...]                          # (rep, s)
            kmat = jax.lax.dot_general(rows, s2, (((1,), (1,)), ((), ())),
                                       preferred_element_type=f32)      # (rep, ks)
            expv = jnp.dot(kmat, s2, preferred_element_type=f32)        # (rep, s)

            # logits: key index on sublanes (16), all queries on lanes (256).
            logits = q[0:1, :] * expv[0:ks, :]
            for d in range(1, gq):
                logits = logits + q[d:d + 1, :] * expv[d * ks:(d + 1) * ks, :]
            m = jnp.max(logits, axis=0, keepdims=True)                  # (1, s)
            e = jnp.exp(logits - m)                                     # (ks, s)
            p_attn = e * pl.reciprocal(jnp.sum(e, axis=0, keepdims=True),
                                       approx=True)                    # (ks, s)

            # SV: per output channel, elementwise multiply + sublane reduce.
            outs = [jnp.sum(p_attn * expv[(gq + c) * ks:(gq + c + 1) * ks, :],
                            axis=0, keepdims=True) for c in range(gv)]
            return jnp.concatenate(outs, axis=0) + b_ref[pl.ds(ob_off, gv), :]

        # conv_down + bn1 + relu
        wd = w_ref[pl.ds(OFF_WD, width), pl.ds(0, cin)]
        h1 = jnp.maximum(jnp.dot(wd, x, preferred_element_type=f32)
                         + b_ref[pl.ds(B_B1, width), :], 0.0)            # (width, s)

        # height-axis attention (keys vary h, sequence = image column)
        h2 = axial(h1, OFF_WALL_H, B_QB_H, B_OB_H, er96_ref, et)
        # width-axis attention (keys vary w, sequence = image row)
        h3 = axial(h2, OFF_WALL_W, B_QB_W, B_OB_W, et96_ref, er)

        # relu -> conv_up (+bn2 folded) -> +identity -> relu
        wu = w_ref[pl.ds(OFF_WU, cout), pl.ds(0, width)]
        y = (jnp.dot(wu, jnp.maximum(h3, 0.0), preferred_element_type=f32)
             + b_ref[pl.ds(B_B2, cout), :])
        o_ref[0] = jnp.maximum(y + x, 0.0).astype(o_ref.dtype)

    return kernel


# ------------------------------ parameter folding ----------------------------
def _pack_params(p, ks):
    """Fold all BatchNorms into weights/biases and pack into 2 slabs."""
    assert GROUPS == 1
    width, cin = p['w_down'].shape
    cout = p['w_up'].shape[0]
    gq = width // 2
    gv = width
    nkv = gq + gv
    rep = nkv * ks
    wall_rows = rep + 8
    s = ks * ks

    def fold_attn(ap):
        w = ap['w_qkv'] * ap['qkv_s'][:, None]          # fold bn_qkv scale
        b = ap['qkv_b']                                 # bn_qkv shift
        ss = ap['sim_s'][0]                             # bn_similarity scale
        wq = w[:gq] * ss                                # sim scale folded into q
        qb = b[:gq] * ss
        wk = w[gq:2 * gq]                               # k bias dropped exactly
        wv = w[2 * gq:] * ap['out_s'][:, None]          # bn_output scale into v
        pb = ap['out_s'] * b[2 * gq:] + ap['out_b']     # v bias + out shift post-SV
        wall = jnp.zeros((wall_rows, width), jnp.float32)
        wall = wall.at[:rep].set(
            jnp.repeat(jnp.concatenate([wk, wv], axis=0), ks, axis=0))
        wall = wall.at[rep:rep + gq].set(wq)
        return wall, qb, pb

    wall_h, qb_h, pb_h = fold_attn(p['h'])
    wall_w, qb_w, pb_w = fold_attn(p['w'])

    ncols = max(cin, width)
    wpack = jnp.zeros((16 + 2 * wall_rows, ncols), jnp.float32)
    wpack = wpack.at[0:width, 0:cin].set(p['w_down'] * p['bn1_s'][:, None])
    wpack = wpack.at[8:8 + cout, 0:width].set(p['w_up'] * p['bn2_s'][:, None])
    wpack = wpack.at[16:16 + wall_rows, 0:width].set(wall_h)
    wpack = wpack.at[16 + wall_rows:16 + 2 * wall_rows, 0:width].set(wall_w)

    def bc(v):                                          # (r,) -> (r, s)
        return jnp.broadcast_to(v[:, None], (v.shape[0], s))

    bpack = jnp.zeros((48, s), jnp.float32)
    bpack = bpack.at[B_B1:B_B1 + width].set(bc(p['bn1_b']))
    bpack = bpack.at[B_QB_H:B_QB_H + gq].set(bc(qb_h))
    bpack = bpack.at[B_OB_H:B_OB_H + gv].set(bc(pb_h))
    bpack = bpack.at[B_QB_W:B_QB_W + gq].set(bc(qb_w))
    bpack = bpack.at[B_OB_W:B_OB_W + gv].set(bc(pb_w))
    bpack = bpack.at[B_B2:B_B2 + cout].set(bc(p['bn2_b']))
    return wpack, bpack


# ------------------------------ public wrapper --------------------------------
def axial_block_forward(x_nchw, params):
    """AxialBlock_wopos.forward — input/output NCHW like PyTorch."""
    n, cin, hh, ww = x_nchw.shape
    assert hh == ww
    s = hh * ww
    width = params['w_down'].shape[0]
    cout = params['w_up'].shape[0]
    assert cout == cin  # downsample is None -> identity residual
    gq, gv = width // 2, width
    nkv = gq + gv

    wpack, bpack = _pack_params(params, hh)

    # internal layout: p = h*W + w  ->  x slab is a PURE reshape of NCHW
    x_cp = x_nchw.reshape(n, cin, s)

    # constant 0/1 selector matrices (shape-only; constant-folded under jit)
    p_idx = jnp.arange(s, dtype=jnp.int32)
    et = (p_idx[None, :] % ww ==
          jnp.arange(ww, dtype=jnp.int32)[:, None]).astype(jnp.float32)   # (W, s)
    er = (p_idx[None, :] // ww ==
          jnp.arange(hh, dtype=jnp.int32)[:, None]).astype(jnp.float32)   # (H, s)
    et96 = jnp.tile(et, (nkv, 1))
    er96 = jnp.tile(er, (nkv, 1))

    out = pl.pallas_call(
        _make_fused_kernel(hh, ww, cin, width, cout),
        out_shape=jax.ShapeDtypeStruct((n, cout, s), x_nchw.dtype),
        grid=(n,),
        in_specs=[
            pl.BlockSpec((1, cin, s), lambda i: (i, 0, 0)),
            pl.BlockSpec(et96.shape, lambda i: (0, 0)),
            pl.BlockSpec(er96.shape, lambda i: (0, 0)),
            pl.BlockSpec(wpack.shape, lambda i: (0, 0)),
            pl.BlockSpec(bpack.shape, lambda i: (0, 0)),
        ],
        out_specs=pl.BlockSpec((1, cout, s), lambda i: (i, 0, 0)),
        compiler_params=pltpu.CompilerParams(dimension_semantics=("parallel",)),
    )(x_cp, et96, er96, wpack, bpack)

    return out.reshape(n, cout, hh, ww)      # pure reshape, no transpose


# ------------------------------ parameter setup -------------------------------
def _bn_fold(key, c):
    k1, k2, k3, k4 = jax.random.split(key, 4)
    gamma = jax.random.uniform(k1, (c,), jnp.float32, 0.5, 1.5)
    beta = 0.1 * jax.random.normal(k2, (c,), jnp.float32)
    mean = 0.1 * jax.random.normal(k3, (c,), jnp.float32)
    var = jax.random.uniform(k4, (c,), jnp.float32, 0.5, 1.5)
    scale = gamma / jnp.sqrt(var + BN_EPS)
    shift = beta - mean * scale
    return scale, shift


def _attn_params(key, cin, cout, groups):
    k1, k2, k3, k4 = jax.random.split(key, 4)
    w_qkv = jnp.sqrt(1.0 / cin) * jax.random.normal(k1, (2 * cout, cin), jnp.float32)
    qs, qb = _bn_fold(k2, 2 * cout)       # bn_qkv
    ss, sb = _bn_fold(k3, groups)         # bn_similarity
    os_, ob = _bn_fold(k4, cout)          # bn_output
    return dict(w_qkv=w_qkv, qkv_s=qs, qkv_b=qb, sim_s=ss, sim_b=sb,
                out_s=os_, out_b=ob)


def init_params(key):
    ks = jax.random.split(key, 6)
    w_down = jnp.sqrt(1.0 / INPLANES) * jax.random.normal(
        ks[0], (WIDTH, INPLANES), jnp.float32)
    bn1_s, bn1_b = _bn_fold(ks[1], WIDTH)
    hblk = _attn_params(ks[2], WIDTH, WIDTH, GROUPS)
    wblk = _attn_params(ks[3], WIDTH, WIDTH, GROUPS)
    w_up = jnp.sqrt(1.0 / WIDTH) * jax.random.normal(
        ks[4], (PLANES * 2, WIDTH), jnp.float32)
    bn2_s, bn2_b = _bn_fold(ks[5], PLANES * 2)
    return dict(w_down=w_down, bn1_s=bn1_s, bn1_b=bn1_b, h=hblk, w=wblk,
                w_up=w_up, bn2_s=bn2_s, bn2_b=bn2_b)


# ---------------------------- pure-JAX reference ------------------------------
def _axial_ref(x_nhwc, p, groups, along_h):
    n, h, w_sp, c = x_nhwc.shape
    cout = p['w_qkv'].shape[0] // 2
    gp = cout // groups
    if along_h:
        xs = jnp.transpose(x_nhwc, (0, 2, 1, 3)).reshape(n * w_sp, h, c)
        seq_len = h
    else:
        xs = x_nhwc.reshape(n * h, w_sp, c)
        seq_len = w_sp
    b = xs.shape[0]
    qkv = jnp.einsum('blc,dc->bld', xs, p['w_qkv']) * p['qkv_s'] + p['qkv_b']
    qkv = qkv.reshape(b, seq_len, groups, 2 * gp)
    q = qkv[..., : gp // 2]
    k = qkv[..., gp // 2: gp]
    v = qkv[..., gp:]
    qk = jnp.einsum('bigc,bjgc->bgij', q, k)
    qk = qk * p['sim_s'].reshape(1, groups, 1, 1) + p['sim_b'].reshape(1, groups, 1, 1)
    sim = jax.nn.softmax(qk, axis=-1)
    sv = jnp.einsum('bgij,bjgc->bigc', sim, v).reshape(b, seq_len, cout)
    sv = sv * p['out_s'] + p['out_b']
    if along_h:
        return sv.reshape(n, w_sp, seq_len, cout).transpose(0, 2, 1, 3)
    return sv.reshape(n, h, seq_len, cout)


def ref_block(x_nchw, p):
    x = jnp.transpose(x_nchw, (0, 2, 3, 1))
    out = jnp.einsum('nhwc,oc->nhwo', x, p['w_down']) * p['bn1_s'] + p['bn1_b']
    out = jnp.maximum(out, 0.0)
    out = _axial_ref(out, p['h'], GROUPS, along_h=True)
    out = _axial_ref(out, p['w'], GROUPS, along_h=False)
    out = jnp.maximum(out, 0.0)
    out = jnp.einsum('nhwc,oc->nhwo', out, p['w_up']) * p['bn2_s'] + p['bn2_b']
    out = jnp.maximum(out + x, 0.0)
    return jnp.transpose(out, (0, 3, 1, 2))


# ----------------------------------- main -------------------------------------
if __name__ == "__main__":
    key = jax.random.PRNGKey(0)
    kx, kp = jax.random.split(key)
    x = jax.random.normal(kx, (N, INPLANES, H, W), jnp.float32)
    params = init_params(kp)

    fwd = jax.jit(axial_block_forward)
    out = jax.block_until_ready(fwd(x, params))
    assert out.shape == (N, PLANES * 2, H, W), out.shape

    ref = ref_block(x, params)
    np.testing.assert_allclose(np.asarray(out), np.asarray(ref),
                               rtol=2e-2, atol=2e-2)
    print("KERNEL_OK")
</pallas_src>

<mosaic_0001>
module attributes {stable_mosaic.version = 11 : i64} {
  func.func @kernel(%arg0: i32, %arg1: memref<1x8x256xf32, #tpu.memory_space<vmem>>, %arg2: memref<96x256xf32, #tpu.memory_space<vmem>>, %arg3: memref<96x256xf32, #tpu.memory_space<vmem>>, %arg4: memref<224x8xf32, #tpu.memory_space<vmem>>, %arg5: memref<48x256xf32, #tpu.memory_space<vmem>>, %arg6: memref<1x8x256xf32, #tpu.memory_space<vmem>>) attributes {dimension_semantics = [#tpu.dimension_semantics<parallel>], iteration_bounds = array<i64: 2>, scalar_prefetch = 0 : i64, scratch_operands = 0 : i64, tpu.core_type = #tpu.core_type<tc>, window_params = [{transform_indices = @transform_0, window_bounds = array<i64: 1, 8, 256>}, {pipeline_mode = #tpu.pipeline_mode<synchronous>, transform_indices = @transform_1, window_bounds = array<i64: 96, 256>}, {pipeline_mode = #tpu.pipeline_mode<synchronous>, transform_indices = @transform_2, window_bounds = array<i64: 96, 256>}, {pipeline_mode = #tpu.pipeline_mode<synchronous>, transform_indices = @transform_3, window_bounds = array<i64: 224, 8>}, {pipeline_mode = #tpu.pipeline_mode<synchronous>, transform_indices = @transform_4, window_bounds = array<i64: 48, 256>}, {transform_indices = @transform_5, window_bounds = array<i64: 1, 8, 256>}]} {
    %c0 = arith.constant 0 : index
    %c0_0 = arith.constant 0 : index
    %c0_1 = arith.constant 0 : index
    %0 = vector.load %arg1[%c0, %c0_0, %c0_1] : memref<1x8x256xf32, #tpu.memory_space<vmem>>, vector<1x8x256xf32>
    %1 = vector.shape_cast %0 : vector<1x8x256xf32> to vector<8x256xf32>
    %c0_2 = arith.constant 0 : index
    %c0_3 = arith.constant 0 : index
    %2 = vector.load %arg2[%c0_2, %c0_3] : memref<96x256xf32, #tpu.memory_space<vmem>>, vector<16x256xf32>
    %c0_4 = arith.constant 0 : index
    %c0_5 = arith.constant 0 : index
    %3 = vector.load %arg3[%c0_4, %c0_5] : memref<96x256xf32, #tpu.memory_space<vmem>>, vector<16x256xf32>
    %c0_6 = arith.constant 0 : index
    %c0_7 = arith.constant 0 : index
    %4 = vector.load %arg4[%c0_6, %c0_7] : memref<224x8xf32, #tpu.memory_space<vmem>>, vector<4x8xf32>
    %cst = arith.constant dense<0.000000e+00> : vector<4x256xf32>
    %5 = tpu.matmul %4, %1, %cst {dimension_numbers = #tpu.dot_dimension_numbers<[1], [0], [0], [1], [0, 0, 1, 1], [], []>} : vector<4x8xf32>, vector<8x256xf32>, vector<4x256xf32> -> vector<4x256xf32>
    %c0_8 = arith.constant 0 : index
    %c0_9 = arith.constant 0 : index
    %6 = vector.load %arg5[%c0_8, %c0_9] : memref<48x256xf32, #tpu.memory_space<vmem>>, vector<4x256xf32>
    %7 = arith.addf %5, %6 : vector<4x256xf32>
    %cst_10 = arith.constant 0.000000e+00 : f32
    %8 = vector.broadcast %cst_10 : f32 to vector<4x256xf32>
    %9 = arith.maximumf %7, %8 : vector<4x256xf32>
    %c16 = arith.constant 16 : index
    %c0_11 = arith.constant 0 : index
    %10 = vector.load %arg4[%c16, %c0_11] : memref<224x8xf32, #tpu.memory_space<vmem>>, vector<104x4xf32>
    %cst_12 = arith.constant dense<0.000000e+00> : vector<104x256xf32>
    %11 = tpu.matmul %10, %9, %cst_12 {dimension_numbers = #tpu.dot_dimension_numbers<[1], [0], [0], [1], [0, 0, 1, 1], [], []>} : vector<104x4xf32>, vector<4x256xf32>, vector<104x256xf32> -> vector<104x256xf32>
    %12 = vector.extract_strided_slice %11 {offsets = [96, 0], sizes = [2, 256], strides = [1, 1]} : vector<104x256xf32> to vector<2x256xf32>
    %c8 = arith.constant 8 : index
    %c0_13 = arith.constant 0 : index
    %13 = vector.load %arg5[%c8, %c0_13] : memref<48x256xf32, #tpu.memory_space<vmem>>, vector<2x256xf32>
    %14 = arith.addf %12, %13 : vector<2x256xf32>
    %15 = vector.extract_strided_slice %11 {offsets = [0, 0], sizes = [96, 256], strides = [1, 1]} : vector<104x256xf32> to vector<96x256xf32>
    %c0_14 = arith.constant 0 : index
    %c0_15 = arith.constant 0 : index
    %16 = vector.load %arg3[%c0_14, %c0_15] : memref<96x256xf32, #tpu.memory_space<vmem>>, vector<96x256xf32>
    %17 = arith.mulf %15, %16 : vector<96x256xf32>
    %cst_16 = arith.constant dense<0.000000e+00> : vector<96x16xf32>
    %18 = tpu.matmul %17, %2, %cst_16 {dimension_numbers = #tpu.dot_dimension_numbers<[1], [1], [0], [0], [0, 0, 1, 0], [], []>} : vector<96x256xf32>, vector<16x256xf32>, vector<96x16xf32> -> vector<96x16xf32>
    %cst_17 = arith.constant dense<0.000000e+00> : vector<96x256xf32>
    %19 = tpu.matmul %18, %2, %cst_17 {dimension_numbers = #tpu.dot_dimension_numbers<[1], [0], [0], [1], [0, 0, 1, 1], [], []>} : vector<96x16xf32>, vector<16x256xf32>, vector<96x256xf32> -> vector<96x256xf32>
    %20 = vector.extract_strided_slice %14 {offsets = [0, 0], sizes = [1, 256], strides = [1, 1]} : vector<2x256xf32> to vector<1x256xf32>
    %21 = vector.extract_strided_slice %19 {offsets = [0, 0], sizes = [16, 256], strides = [1, 1]} : vector<96x256xf32> to vector<16x256xf32>
    %22 = vector.broadcast %20 : vector<1x256xf32> to vector<16x256xf32>
    %23 = arith.mulf %22, %21 : vector<16x256xf32>
    %24 = vector.extract_strided_slice %14 {offsets = [1, 0], sizes = [1, 256], strides = [1, 1]} : vector<2x256xf32> to vector<1x256xf32>
    %25 = vector.extract_strided_slice %19 {offsets = [16, 0], sizes = [16, 256], strides = [1, 1]} : vector<96x256xf32> to vector<16x256xf32>
    %26 = vector.broadcast %24 : vector<1x256xf32> to vector<16x256xf32>
    %27 = arith.mulf %26, %25 : vector<16x256xf32>
    %28 = arith.addf %23, %27 : vector<16x256xf32>
    %cst_18 = arith.constant dense<0xFF800000> : vector<256xf32>
    %29 = vector.multi_reduction <maximumf>, %28, %cst_18 [0] : vector<16x256xf32> to vector<256xf32>
    %30 = vector.shape_cast %29 : vector<256xf32> to vector<1x256xf32>
    %31 = vector.broadcast %30 : vector<1x256xf32> to vector<16x256xf32>
    %32 = arith.subf %28, %31 : vector<16x256xf32>
    %33 = math.exp %32 : vector<16x256xf32>
    %cst_19 = arith.constant dense<0.000000e+00> : vector<256xf32>
    %34 = vector.multi_reduction <add>, %33, %cst_19 [0] : vector<16x256xf32> to vector<256xf32>
    %35 = vector.shape_cast %34 : vector<256xf32> to vector<1x256xf32>
    %36 = tpu.reciprocal %35 {approx = true} : vector<1x256xf32> -> vector<1x256xf32>
    %37 = vector.broadcast %36 : vector<1x256xf32> to vector<16x256xf32>
    %38 = arith.mulf %33, %37 : vector<16x256xf32>
    %39 = vector.extract_strided_slice %19 {offsets = [32, 0], sizes = [16, 256], strides = [1, 1]} : vector<96x256xf32> to vector<16x256xf32>
    %40 = arith.mulf %38, %39 : vector<16x256xf32>
    %cst_20 = arith.constant dense<0.000000e+00> : vector<256xf32>
    %41 = vector.multi_reduction <add>, %40, %cst_20 [0] : vector<16x256xf32> to vector<256xf32>
    %42 = vector.shape_cast %41 : vector<256xf32> to vector<1x256xf32>
    %43 = vector.extract_strided_slice %19 {offsets = [48, 0], sizes = [16, 256], strides = [1, 1]} : vector<96x256xf32> to vector<16x256xf32>
    %44 = arith.mulf %38, %43 : vector<16x256xf32>
    %cst_21 = arith.constant dense<0.000000e+00> : vector<256xf32>
    %45 = vector.multi_reduction <add>, %44, %cst_21 [0] : vector<16x256xf32> to vector<256xf32>
    %46 = vector.shape_cast %45 : vector<256xf32> to vector<1x256xf32>
    %47 = vector.extract_strided_slice %19 {offsets = [64, 0], sizes = [16, 256], strides = [1, 1]} : vector<96x256xf32> to vector<16x256xf32>
    %48 = arith.mulf %38, %47 : vector<16x256xf32>
    %cst_22 = arith.constant dense<0.000000e+00> : vector<256xf32>
    %49 = vector.multi_reduction <add>, %48, %cst_22 [0] : vector<16x256xf32> to vector<256xf32>
    %50 = vector.shape_cast %49 : vector<256xf32> to vector<1x256xf32>
    %51 = vector.extract_strided_slice %19 {offsets = [80, 0], sizes = [16, 256], strides = [1, 1]} : vector<96x256xf32> to vector<16x256xf32>
    %52 = arith.mulf %38, %51 : vector<16x256xf32>
    %cst_23 = arith.constant dense<0.000000e+00> : vector<256xf32>
    %53 = vector.multi_reduction <add>, %52, %cst_23 [0] : vector<16x256xf32> to vector<256xf32>
    %54 = vector.shape_cast %53 : vector<256xf32> to vector<1x256xf32>
    %55 = tpu.concatenate %42, %46, %50, %54 in 0 : vector<1x256xf32>, vector<1x256xf32>, vector<1x256xf32>, vector<1x256xf32> -> vector<4x256xf32>
    %c16_24 = arith.constant 16 : index
    %c0_25 = arith.constant 0 : index
    %56 = vector.load %arg5[%c16_24, %c0_25] : memref<48x256xf32, #tpu.memory_space<vmem>>, vector<4x256xf32>
    %57 = arith.addf %55, %56 : vector<4x256xf32>
    %c120 = arith.constant 120 : index
    %c0_26 = arith.constant 0 : index
    %58 = vector.load %arg4[%c120, %c0_26] : memref<224x8xf32, #tpu.memory_space<vmem>>, vector<104x4xf32>
    %cst_27 = arith.constant dense<0.000000e+00> : vector<104x256xf32>
    %59 = tpu.matmul %58, %57, %cst_27 {dimension_numbers = #tpu.dot_dimension_numbers<[1], [0], [0], [1], [0, 0, 1, 1], [], []>} : vector<104x4xf32>, vector<4x256xf32>, vector<104x256xf32> -> vector<104x256xf32>
    %60 = vector.extract_strided_slice %59 {offsets = [96, 0], sizes = [2, 256], strides = [1, 1]} : vector<104x256xf32> to vector<2x256xf32>
    %c24 = arith.constant 24 : index
    %c0_28 = arith.constant 0 : index
    %61 = vector.load %arg5[%c24, %c0_28] : memref<48x256xf32, #tpu.memory_space<vmem>>, vector<2x256xf32>
    %62 = arith.addf %60, %61 : vector<2x256xf32>
    %63 = vector.extract_strided_slice %59 {offsets = [0, 0], sizes = [96, 256], strides = [1, 1]} : vector<104x256xf32> to vector<96x256xf32>
    %c0_29 = arith.constant 0 : index
    %c0_30 = arith.constant 0 : index
    %64 = vector.load %arg2[%c0_29, %c0_30] : memref<96x256xf32, #tpu.memory_space<vmem>>, vector<96x256xf32>
    %65 = arith.mulf %63, %64 : vector<96x256xf32>
    %cst_31 = arith.constant dense<0.000000e+00> : vector<96x16xf32>
    %66 = tpu.matmul %65, %3, %cst_31 {dimension_numbers = #tpu.dot_dimension_numbers<[1], [1], [0], [0], [0, 0, 1, 0], [], []>} : vector<96x256xf32>, vector<16x256xf32>, vector<96x16xf32> -> vector<96x16xf32>
    %cst_32 = arith.constant dense<0.000000e+00> : vector<96x256xf32>
    %67 = tpu.matmul %66, %3, %cst_32 {dimension_numbers = #tpu.dot_dimension_numbers<[1], [0], [0], [1], [0, 0, 1, 1], [], []>} : vector<96x16xf32>, vector<16x256xf32>, vector<96x256xf32> -> vector<96x256xf32>
    %68 = vector.extract_strided_slice %62 {offsets = [0, 0], sizes = [1, 256], strides = [1, 1]} : vector<2x256xf32> to vector<1x256xf32>
    %69 = vector.extract_strided_slice %67 {offsets = [0, 0], sizes = [16, 256], strides = [1, 1]} : vector<96x256xf32> to vector<16x256xf32>
    %70 = vector.broadcast %68 : vector<1x256xf32> to vector<16x256xf32>
    %71 = arith.mulf %70, %69 : vector<16x256xf32>
    %72 = vector.extract_strided_slice %62 {offsets = [1, 0], sizes = [1, 256], strides = [1, 1]} : vector<2x256xf32> to vector<1x256xf32>
    %73 = vector.extract_strided_slice %67 {offsets = [16, 0], sizes = [16, 256], strides = [1, 1]} : vector<96x256xf32> to vector<16x256xf32>
    %74 = vector.broadcast %72 : vector<1x256xf32> to vector<16x256xf32>
    %75 = arith.mulf %74, %73 : vector<16x256xf32>
    %76 = arith.addf %71, %75 : vector<16x256xf32>
    %cst_33 = arith.constant dense<0xFF800000> : vector<256xf32>
    %77 = vector.multi_reduction <maximumf>, %76, %cst_33 [0] : vector<16x256xf32> to vector<256xf32>
    %78 = vector.shape_cast %77 : vector<256xf32> to vector<1x256xf32>
    %79 = vector.broadcast %78 : vector<1x256xf32> to vector<16x256xf32>
    %80 = arith.subf %76, %79 : vector<16x256xf32>
    %81 = math.exp %80 : vector<16x256xf32>
    %cst_34 = arith.constant dense<0.000000e+00> : vector<256xf32>
    %82 = vector.multi_reduction <add>, %81, %cst_34 [0] : vector<16x256xf32> to vector<256xf32>
    %83 = vector.shape_cast %82 : vector<256xf32> to vector<1x256xf32>
    %84 = tpu.reciprocal %83 {approx = true} : vector<1x256xf32> -> vector<1x256xf32>
    %85 = vector.broadcast %84 : vector<1x256xf32> to vector<16x256xf32>
    %86 = arith.mulf %81, %85 : vector<16x256xf32>
    %87 = vector.extract_strided_slice %67 {offsets = [32, 0], sizes = [16, 256], strides = [1, 1]} : vector<96x256xf32> to vector<16x256xf32>
    %88 = arith.mulf %86, %87 : vector<16x256xf32>
    %cst_35 = arith.constant dense<0.000000e+00> : vector<256xf32>
    %89 = vector.multi_reduction <add>, %88, %cst_35 [0] : vector<16x256xf32> to vector<256xf32>
    %90 = vector.shape_cast %89 : vector<256xf32> to vector<1x256xf32>
    %91 = vector.extract_strided_slice %67 {offsets = [48, 0], sizes = [16, 256], strides = [1, 1]} : vector<96x256xf32> to vector<16x256xf32>
    %92 = arith.mulf %86, %91 : vector<16x256xf32>
    %cst_36 = arith.constant dense<0.000000e+00> : vector<256xf32>
    %93 = vector.multi_reduction <add>, %92, %cst_36 [0] : vector<16x256xf32> to vector<256xf32>
    %94 = vector.shape_cast %93 : vector<256xf32> to vector<1x256xf32>
    %95 = vector.extract_strided_slice %67 {offsets = [64, 0], sizes = [16, 256], strides = [1, 1]} : vector<96x256xf32> to vector<16x256xf32>
    %96 = arith.mulf %86, %95 : vector<16x256xf32>
    %cst_37 = arith.constant dense<0.000000e+00> : vector<256xf32>
    %97 = vector.multi_reduction <add>, %96, %cst_37 [0] : vector<16x256xf32> to vector<256xf32>
    %98 = vector.shape_cast %97 : vector<256xf32> to vector<1x256xf32>
    %99 = vector.extract_strided_slice %67 {offsets = [80, 0], sizes = [16, 256], strides = [1, 1]} : vector<96x256xf32> to vector<16x256xf32>
    %100 = arith.mulf %86, %99 : vector<16x256xf32>
    %cst_38 = arith.constant dense<0.000000e+00> : vector<256xf32>
    %101 = vector.multi_reduction <add>, %100, %cst_38 [0] : vector<16x256xf32> to vector<256xf32>
    %102 = vector.shape_cast %101 : vector<256xf32> to vector<1x256xf32>
    %103 = tpu.concatenate %90, %94, %98, %102 in 0 : vector<1x256xf32>, vector<1x256xf32>, vector<1x256xf32>, vector<1x256xf32> -> vector<4x256xf32>
    %c32 = arith.constant 32 : index
    %c0_39 = arith.constant 0 : index
    %104 = vector.load %arg5[%c32, %c0_39] : memref<48x256xf32, #tpu.memory_space<vmem>>, vector<4x256xf32>
    %105 = arith.addf %103, %104 : vector<4x256xf32>
    %c8_40 = arith.constant 8 : index
    %c0_41 = arith.constant 0 : index
    %106 = vector.load %arg4[%c8_40, %c0_41] : memref<224x8xf32, #tpu.memory_space<vmem>>, vector<8x4xf32>
    %cst_42 = arith.constant 0.000000e+00 : f32
    %107 = vector.broadcast %cst_42 : f32 to vector<4x256xf32>
    %108 = arith.maximumf %105, %107 : vector<4x256xf32>
    %cst_43 = arith.constant dense<0.000000e+00> : vector<8x256xf32>
    %109 = tpu.matmul %106, %108, %cst_43 {dimension_numbers = #tpu.dot_dimension_numbers<[1], [0], [0], [1], [0, 0, 1, 1], [], []>} : vector<8x4xf32>, vector<4x256xf32>, vector<8x256xf32> -> vector<8x256xf32>
    %c40 = arith.constant 40 : index
    %c0_44 = arith.constant 0 : index
    %110 = vector.load %arg5[%c40, %c0_44] : memref<48x256xf32, #tpu.memory_space<vmem>>, vector<8x256xf32>
    %111 = arith.addf %109, %110 : vector<8x256xf32>
    %112 = arith.addf %111, %1 : vector<8x256xf32>
    %cst_45 = arith.constant 0.000000e+00 : f32
    %113 = vector.broadcast %cst_45 : f32 to vector<8x256xf32>
    %114 = arith.maximumf %112, %113 : vector<8x256xf32>
    %c0_46 = arith.constant 0 : index
    %c0_47 = arith.constant 0 : index
    %c0_48 = arith.constant 0 : index
    %115 = vector.load %arg6[%c0_46, %c0_47, %c0_48] : memref<1x8x256xf32, #tpu.memory_space<vmem>>, vector<1x8x256xf32>
    %116 = vector.shape_cast %115 : vector<1x8x256xf32> to vector<8x256xf32>
    %117 = vector.shape_cast %114 : vector<8x256xf32> to vector<1x8x256xf32>
    tpu.vector_store %arg6[%c0_46, %c0_47, %c0_48], %117 {strides = array<i32>} : memref<1x8x256xf32, #tpu.memory_space<vmem>>, vector<1x8x256xf32>,
    return
  }
  func.func @transform_0(%arg0: i32) -> (i32, i32, i32) {
    %c0_i32 = arith.constant 0 : i32
    %c0_i32_0 = arith.constant 0 : i32
    %c0_i32_1 = arith.constant 0 : i32
    return %arg0, %c0_i32, %c0_i32_0 : i32, i32, i32
  }
  func.func @transform_1(%arg0: i32) -> (i32, i32) {
    %c0_i32 = arith.constant 0 : i32
    %c0_i32_0 = arith.constant 0 : i32
    %c0_i32_1 = arith.constant 0 : i32
    return %c0_i32, %c0_i32_0 : i32, i32
  }
  func.func @transform_2(%arg0: i32) -> (i32, i32) {
    %c0_i32 = arith.constant 0 : i32
    %c0_i32_0 = arith.constant 0 : i32
    %c0_i32_1 = arith.constant 0 : i32
    return %c0_i32, %c0_i32_0 : i32, i32
  }
  func.func @transform_3(%arg0: i32) -> (i32, i32) {
    %c0_i32 = arith.constant 0 : i32
    %c0_i32_0 = arith.constant 0 : i32
    %c0_i32_1 = arith.constant 0 : i32
    return %c0_i32, %c0_i32_0 : i32, i32
  }
  func.func @transform_4(%arg0: i32) -> (i32, i32) {
    %c0_i32 = arith.constant 0 : i32
    %c0_i32_0 = arith.constant 0 : i32
    %c0_i32_1 = arith.constant 0 : i32
    return %c0_i32, %c0_i32_0 : i32, i32
  }
  func.func @transform_5(%arg0: i32) -> (i32, i32, i32) {
    %c0_i32 = arith.constant 0 : i32
    %c0_i32_0 = arith.constant 0 : i32
    %c0_i32_1 = arith.constant 0 : i32
    return %arg0, %c0_i32, %c0_i32_0 : i32, i32, i32
  }
}

</mosaic_0001>

<llo_original>
// kernel: axial_block_forward.1
$region0: #{axial_block_forward.1}
  #allocation0 [shape = 'u32[]', space=smem, size = 0x4, offset = 0x4, fixed_abs, tag = 'smem constant byte address 0x4 - core index']
  #allocation1 [shape = 'u32[144,128]{1,0:T(1,128)}', space=vmem, size = 0x12000, scoped, tag = 'internal scratch']
  %s0 = inlined_call_operand.vmem [shape: f32[2,8,256], index: 0, kind: input, shape index: {}]
  %s1 = inlined_call_operand.vmem [shape: f32[96,256], index: 1, kind: input, shape index: {}]
  %s2 = inlined_call_operand.vmem [shape: f32[96,256], index: 2, kind: input, shape index: {}]
  %s3 = inlined_call_operand.vmem [shape: f32[224,8], index: 3, kind: input, shape index: {}]
  %s4 = inlined_call_operand.vmem [shape: f32[48,256], index: 4, kind: input, shape index: {}]
  %s5 = inlined_call_operand.vmem [shape: f32[2,8,256], index: 5, kind: output, shape index: {}]
  %s6 = sld [smem:[#allocation0]]
  $region53: #{axial_block_forward.1} parent=0
    _
  %s8 = ssub.s32 1, %s6
  %s9 = scalar_select 0, %s8, %s6
  loop: start=0, step=1, limit=4
  $region2: #{axial_block_forward.1} parent=0 // loop_pre_header
    _
  $region3: #{axial_block_forward.1} parent=0 // loop_header
    %s11 = sphi 0, %s15
    %p12 = scmp.ge.s32.totalorder %s11, 4
    %s21 = sphi 0, %s23
    %s24 = sphi 0, %s21
    %s25 = sphi 0, %s24
    %s41 = sphi 0, %s25
    %s45 = sphi 0, %s45
    %s47 = sphi 0, %s45
    %s48 = sphi 0, %s47
    %s62 = sphi 0, %s48
    %s66 = sphi 0, %s66
    %s68 = sphi 0, %s66
    %s69 = sphi 0, %s68
    %s83 = sphi 0, %s69
    %s87 = sphi 0, %s87
    %s89 = sphi 0, %s87
    %s90 = sphi 0, %s89
    %s104 = sphi 0, %s90
    %s108 = sphi 0, %s108
    %s110 = sphi 0, %s108
    %s111 = sphi 0, %s110
    %s125 = sphi 0, %s111
    %s131 = sphi 0, %s133
    %s134 = sphi 0, %s131
    %s135 = sphi 0, %s134
    %s151 = sphi 0, %s135
  $region4: #{axial_block_forward.1} parent=0 // loop_header_branch
    %14 = sbr.rel (%p12) target = $region8
  $region5: #{axial_block_forward.1} parent=0 // loop_body
    %s16 = ssub.s32 %s11, 1
    %s17 = ssub.s32 %s11, 2
    %s18 = sadd.s32 %s11, 1
    %s19 = ssub.s32 %s11, %s18
    %p20 = scmp.eq.s32.totalorder %s19, 0
    %s22 = sadd.s32 %s21, 1
    %s23 = scalar_select %p20, %s21, %s22
    %p26 = pneg %p20
    %p27 = scmp.eq.s32.totalorder %s11, 1
    %p28 = por %p26, %p27
    %p29 = scmp.ne.s32.totalorder %s21, %s24
    %p30 = scmp.eq.s32.totalorder %s11, 0
    %p31 = por %p29, %p30
    %p32 = scmp.ne.s32.totalorder %s21, %s24
    %p33 = scmp.eq.s32.totalorder %s16, 1
    %p34 = por %p32, %p33
    %p35 = scmp.ne.s32.totalorder %s24, %s25
    %p36 = scmp.eq.s32.totalorder %s16, 0
    %p37 = por %p35, %p36
    %p38 = scmp.ne.s32.totalorder %s24, %s25
    %p39 = scmp.eq.s32.totalorder %s17, 1
    %p40 = por %p38, %p39
    %p42 = scmp.ne.s32.totalorder %s25, %s41
    %p43 = scmp.eq.s32.totalorder %s17, 0
    %p44 = por %p42, %p43
    %s46 = sadd.s32 %s45, 1
    %p49 = scmp.eq.s32.totalorder %s11, 1
    %p50 = scmp.ne.s32.totalorder %s45, %s47
    %p51 = scmp.eq.s32.totalorder %s11, 0
    %p52 = por %p50, %p51
    %p53 = scmp.ne.s32.totalorder %s45, %s47
    %p54 = scmp.eq.s32.totalorder %s16, 1
    %p55 = por %p53, %p54
    %p56 = scmp.ne.s32.totalorder %s47, %s48
    %p57 = scmp.eq.s32.totalorder %s16, 0
    %p58 = por %p56, %p57
    %p59 = scmp.ne.s32.totalorder %s47, %s48
    %p60 = scmp.eq.s32.totalorder %s17, 1
    %p61 = por %p59, %p60
    %p63 = scmp.ne.s32.totalorder %s48, %s62
    %p64 = scmp.eq.s32.totalorder %s17, 0
    %p65 = por %p63, %p64
    %s67 = sadd.s32 %s66, 1
    %p70 = scmp.eq.s32.totalorder %s11, 1
    %p71 = scmp.ne.s32.totalorder %s66, %s68
    %p72 = scmp.eq.s32.totalorder %s11, 0
    %p73 = por %p71, %p72
    %p74 = scmp.ne.s32.totalorder %s66, %s68
    %p75 = scmp.eq.s32.totalorder %s16, 1
    %p76 = por %p74, %p75
    %p77 = scmp.ne.s32.totalorder %s68, %s69
    %p78 = scmp.eq.s32.totalorder %s16, 0
    %p79 = por %p77, %p78
    %p80 = scmp.ne.s32.totalorder %s68, %s69
    %p81 = scmp.eq.s32.totalorder %s17, 1
    %p82 = por %p80, %p81
    %p84 = scmp.ne.s32.totalorder %s69, %s83
    %p85 = scmp.eq.s32.totalorder %s17, 0
    %p86 = por %p84, %p85
    %s88 = sadd.s32 %s87, 1
    %p91 = scmp.eq.s32.totalorder %s11, 1
    %p92 = scmp.ne.s32.totalorder %s87, %s89
    %p93 = scmp.eq.s32.totalorder %s11, 0
    %p94 = por %p92, %p93
    %p95 = scmp.ne.s32.totalorder %s87, %s89
    %p96 = scmp.eq.s32.totalorder %s16, 1
    %p97 = por %p95, %p96
    %p98 = scmp.ne.s32.totalorder %s89, %s90
    %p99 = scmp.eq.s32.totalorder %s16, 0
    %p100 = por %p98, %p99
    %p101 = scmp.ne.s32.totalorder %s89, %s90
    %p102 = scmp.eq.s32.totalorder %s17, 1
    %p103 = por %p101, %p102
    %p105 = scmp.ne.s32.totalorder %s90, %s104
    %p106 = scmp.eq.s32.totalorder %s17, 0
    %p107 = por %p105, %p106
    %s109 = sadd.s32 %s108, 1
    %p112 = scmp.eq.s32.totalorder %s11, 1
    %p113 = scmp.ne.s32.totalorder %s108, %s110
    %p114 = scmp.eq.s32.totalorder %s11, 0
    %p115 = por %p113, %p114
    %p116 = scmp.ne.s32.totalorder %s108, %s110
    %p117 = scmp.eq.s32.totalorder %s16, 1
    %p118 = por %p116, %p117
    %p119 = scmp.ne.s32.totalorder %s110, %s111
    %p120 = scmp.eq.s32.totalorder %s16, 0
    %p121 = por %p119, %p120
    %p122 = scmp.ne.s32.totalorder %s110, %s111
    %p123 = scmp.eq.s32.totalorder %s17, 1
    %p124 = por %p122, %p123
    %p126 = scmp.ne.s32.totalorder %s111, %s125
    %p127 = scmp.eq.s32.totalorder %s17, 0
    %p128 = por %p126, %p127
    %s129 = ssub.s32 %s11, %s18
    %p130 = scmp.eq.s32.totalorder %s129, 0
    %s132 = sadd.s32 %s131, 1
    %s133 = scalar_select %p130, %s131, %s132
    %p136 = pneg %p130
    %p137 = scmp.eq.s32.totalorder %s11, 1
    %p138 = por %p136, %p137
    %p139 = scmp.ne.s32.totalorder %s131, %s134
    %p140 = scmp.eq.s32.totalorder %s11, 0
    %p141 = por %p139, %p140
    %p142 = scmp.ne.s32.totalorder %s131, %s134
    %p143 = scmp.eq.s32.totalorder %s16, 1
    %p144 = por %p142, %p143
    %p145 = scmp.ne.s32.totalorder %s134, %s135
    %p146 = scmp.eq.s32.totalorder %s16, 0
    %p147 = por %p145, %p146
    %p148 = scmp.ne.s32.totalorder %s134, %s135
    %p149 = scmp.eq.s32.totalorder %s17, 1
    %p150 = por %p148, %p149
    %p152 = scmp.ne.s32.totalorder %s135, %s151
    %p153 = scmp.eq.s32.totalorder %s17, 0
    %p154 = por %p152, %p153
    %p155 = scmp.le.s32.totalorder 1, %s11
    %p156 = scmp.lt.s32.totalorder %s11, 3
    %p157 = pnand %p155, %p156
    %p158 = pneg %p157
    // Predicated region
    $region9: #{axial_block_forward.1} parent=5 // pred_check
      _
    $region10: #{axial_block_forward.1} parent=5 // pred_check_branch
      %160 = sbr.rel (%p157) target = $region12
    $region11: #{axial_block_forward.1} parent=5 // pred_region
      %s161 = ssub.s32 %s11, 1
      // Predicated region
      $region13: #{axial_block_forward.1} parent=11 // pred_check
        %p162 = pneg %p58
      $region14: #{axial_block_forward.1} parent=11 // pred_check_branch
        %164 = sbr.rel (%p162) target = $region16
      $region15: #{axial_block_forward.1} parent=11 // pred_region
        _
      $region16: #{axial_block_forward.1} parent=11 // pred_fallthru
        _
      // Predicated region
      $region17: #{axial_block_forward.1} parent=11 // pred_check
        %p165 = pneg %p79
      $region18: #{axial_block_forward.1} parent=11 // pred_check_branch
        %167 = sbr.rel (%p165) target = $region20
      $region19: #{axial_block_forward.1} parent=11 // pred_region
        _
      $region20: #{axial_block_forward.1} parent=11 // pred_fallthru
        _
      // Predicated region
      $region21: #{axial_block_forward.1} parent=11 // pred_check
        %p168 = pneg %p100
      $region22: #{axial_block_forward.1} parent=11 // pred_check_branch
        %170 = sbr.rel (%p168) target = $region24
      $region23: #{axial_block_forward.1} parent=11 // pred_region
        _
      $region24: #{axial_block_forward.1} parent=11 // pred_fallthru
        _
      // Predicated region
      $region25: #{axial_block_forward.1} parent=11 // pred_check
        %p171 = pneg %p121
      $region26: #{axial_block_forward.1} parent=11 // pred_check_branch
        %173 = sbr.rel (%p171) target = $region28
      $region27: #{axial_block_forward.1} parent=11 // pred_region
        _
      $region28: #{axial_block_forward.1} parent=11 // pred_fallthru
        _
    $region12: #{axial_block_forward.1} parent=5 // pred_fallthru
      _
    %p174 = scmp.lt.s32.totalorder %s11, 2
    // Predicated region
    $region29: #{axial_block_forward.1} parent=5 // pred_check
      %p175 = pneg %p174
    $region30: #{axial_block_forward.1} parent=5 // pred_check_branch
      %177 = sbr.rel (%p175) target = $region32
    $region31: #{axial_block_forward.1} parent=5 // pred_region
      // Predicated region
      $region33: #{axial_block_forward.1} parent=31 // pred_check
        %p178 = pneg %p31
      $region34: #{axial_block_forward.1} parent=31 // pred_check_branch
        %180 = sbr.rel (%p178) target = $region36
      $region35: #{axial_block_forward.1} parent=31 // pred_region
        %p181 = scmp.lt.s32.totalorder %s11, 1
        %s182 = scalar_select %p181, %s11, 1
        %s183 = smul.addr %s182, 2
        %s184 = smul.addr %s183, 8
        %s185 = scalar_lea.vmem %s0, %s184
      $region36: #{axial_block_forward.1} parent=31 // pred_fallthru
        _
    $region32: #{axial_block_forward.1} parent=5 // pred_fallthru
      _
    %p186 = scmp.le.s32.totalorder 1, %s11
    %p187 = scmp.lt.s32.totalorder %s11, 3
    %p188 = pnand %p186, %p187
    %p189 = pneg %p188
    // Predicated region
    $region37: #{axial_block_forward.1} parent=5 // pred_check
      _
    $region38: #{axial_block_forward.1} parent=5 // pred_check_branch
      %191 = sbr.rel (%p188) target = $region40
    $region39: #{axial_block_forward.1} parent=5 // pred_region
      %s192 = ssub.s32 %s11, 1
      %p193 = scmp.lt.s32.totalorder %s16, 1
      %s194 = scalar_select %p193, %s16, 1
      %s195 = smul.addr %s194, 2
      %s196 = smul.addr %s195, 8
      %s197 = scalar_lea.vmem %s0, %s196
      %p198 = pneg %p37
      %p199 = pneg %p34
      %p200 = pneg %p58
      %p201 = pneg %p55
      %p202 = pneg %p79
      %p203 = pneg %p76
      %p204 = pneg %p100
      %p205 = pneg %p97
      %p206 = pneg %p121
      %p207 = pneg %p118
      %p208 = pneg %p147
      %p209 = pneg %p144
      %p210 = scmp.lt.s32.totalorder %s16, 1
      %s211 = scalar_select %p210, %s16, 1
      %s212 = smul.addr %s211, 2
      %s213 = smul.addr %s212, 8
      %s214 = scalar_lea.vmem %s5, %s213
      %p215 = scmp.lt.s32.totalorder %s16, 1
      %s216 = scalar_select %p215, %s16, 1
      %s217 = smul.addr %s216, 2
      %s218 = smul.addr %s217, 8
      %s219 = scalar_lea.vmem %s0, %s218
      %p220 = scmp.lt.s32.totalorder %s16, 1
      %s221 = scalar_select %p220, %s16, 1
      %s222 = smul.addr %s221, 2
      %s223 = smul.addr %s222, 8
      %s224 = scalar_lea.vmem %s5, %s223
      %v225 = vld [vmem:[%s219] sm:$0xff]
      %v226 = vld [vmem:[%s219 + $0x8] sm:$0xff]
      %v227 = vld [vmem:[%s1] sm:$0xff]
      %v228 = vld [vmem:[%s1 + $0x8] sm:$0xff]
      %v229 = vld [vmem:[%s1 + $0x10] sm:$0xff]
      %v230 = vld [vmem:[%s1 + $0x18] sm:$0xff]
      %v231 = vld [vmem:[%s2] sm:$0xff]
      %v232 = vld [vmem:[%s2 + $0x8] sm:$0xff]
      %v233 = vld [vmem:[%s2 + $0x10] sm:$0xff]
      %v234 = vld [vmem:[%s2 + $0x18] sm:$0xff]
      %v235 = vld [vmem:[%s3] sm:$0xf]
      %v236 = vld [vmem:[%s4] sm:$0xf]
      %v237 = vld [vmem:[%s4 + $0x8] sm:$0xf]
      %vm238 = vcmask 64512
      %v240 = vsel %vm238, %v235, 0
      %242 = vmatprep.subr.mxu0 %v226
      %243 = vmatpush1.msra.mxu0 %v225
      %244 = vmatprep.subr.mxu0 0.0
      %245 = vmatpush1.msra.mxu0 0.0
      %246 = vmatprep.subr.mxu0 0.0
      %247 = vmatpush1.msra.mxu0 0.0
      %248 = vmatprep.subr.mxu0 0.0
      %249 = vmatpush1.msra.mxu0 0.0
      %250 = vmatprep.subr.mxu0 0.0
      %251 = vmatpush1.msra.mxu0 0.0
      %252 = vmatprep.subr.mxu0 0.0
      %253 = vmatpush1.msra.mxu0 0.0
      %254 = vmatprep.subr.mxu0 0.0
      %255 = vmatpush1.msra.mxu0 0.0
      %256 = vmatprep.subr.mxu0 0.0
      %257 = vmatpush1.msra.mxu0 0.0
      %258 = vmatprep.subr.mxu0 0.0
      %259 = vmatpush1.msra.mxu0 0.0
      %260 = vmatprep.subr.mxu0 0.0
      %261 = vmatpush1.msra.mxu0 0.0
      %262 = vmatprep.subr.mxu0 0.0
      %263 = vmatpush1.msra.mxu0 0.0
      %264 = vmatprep.subr.mxu0 0.0
      %265 = vmatpush1.msra.mxu0 0.0
      %266 = vmatprep.subr.mxu0 0.0
      %267 = vmatpush1.msra.mxu0 0.0
      %268 = vmatprep.subr.mxu0 0.0
      %269 = vmatpush1.msra.mxu0 0.0
      %270 = vmatprep.subr.mxu0 0.0
      %271 = vmatpush1.msra.mxu0 0.0
      %272 = vmatprep.subr.mxu0 0.0
      %273 = vmatpush1.msra.mxu0 0.0
      %274 = vmatprep.subr.mxu0 0.0
      %275 = vmatpush1.msra.mxu0 0.0
      %276 = vmatprep.subr.mxu0 0.0
      %277 = vmatpush1.msra.mxu0 0.0
      %278 = vmatprep.subr.mxu0 0.0
      %279 = vmatpush1.msra.mxu0 0.0
      %280 = vmatprep.subr.mxu0 0.0
      %281 = vmatpush1.msra.mxu0 0.0
      %282 = vmatprep.subr.mxu0 0.0
      %283 = vmatpush1.msra.mxu0 0.0
      %284 = vmatprep.subr.mxu0 0.0
      %285 = vmatpush1.msra.mxu0 0.0
      %286 = vmatprep.subr.mxu0 0.0
      %287 = vmatpush1.msra.mxu0 0.0
      %288 = vmatprep.subr.mxu0 0.0
      %289 = vmatpush1.msra.mxu0 0.0
      %290 = vmatprep.subr.mxu0 0.0
      %291 = vmatpush1.msra.mxu0 0.0
      %292 = vmatprep.subr.mxu0 0.0
      %293 = vmatpush1.msra.mxu0 0.0
      %294 = vmatprep.subr.mxu0 0.0
      %295 = vmatpush1.msra.mxu0 0.0
      %296 = vmatprep.subr.mxu0 0.0
      %297 = vmatpush1.msra.mxu0 0.0
      %298 = vmatprep.subr.mxu0 0.0
      %299 = vmatpush1.msra.mxu0 0.0
      %300 = vmatprep.subr.mxu0 0.0
      %301 = vmatpush1.msra.mxu0 0.0
      %302 = vmatprep.subr.mxu0 0.0
      %303 = vmatpush1.msra.mxu0 0.0
      %304 = vmatprep.subr.mxu0 0.0
      %305 = vmatpush1.msra.mxu0 0.0
      %306 = vmatprep.mubr.f32.mxu0 0.0
      %307 = vmatmul.mubr.f32.gmra.mrb[0].mxu0 %v240
      %v308 = vpop.f32.mrb[0].mxu0
      %v309 = vadd.f32 %v236, %v308
      %v310 = vpop.f32.mrb[0].mxu0
      %v311 = vadd.f32 %v237, %v310
      %312 = vdwg.mxu0
      %v313 = vmax.f32 %v309, 0.0
      %v314 = vmax.f32 %v311, 0.0
      %v315 = vld [vmem:[%s3 + $0x10] sm:$0xff]
      %v316 = vld [vmem:[%s3 + $0x18] sm:$0xff]
      %v317 = vld [vmem:[%s3 + $0x20] sm:$0xff]
      %v318 = vld [vmem:[%s3 + $0x28] sm:$0xff]
      %v319 = vld [vmem:[%s3 + $0x30] sm:$0xff]
      %v320 = vld [vmem:[%s3 + $0x38] sm:$0xff]
      %v321 = vld [vmem:[%s3 + $0x40] sm:$0xff]
      %v322 = vld [vmem:[%s3 + $0x48] sm:$0xff]
      %v323 = vld [vmem:[%s3 + $0x50] sm:$0xff]
      %v324 = vld [vmem:[%s3 + $0x58] sm:$0xff]
      %v325 = vld [vmem:[%s3 + $0x60] sm:$0xff]
      %v326 = vld [vmem:[%s3 + $0x68] sm:$0xff]
      %v327 = vld [vmem:[%s3 + $0x70] sm:$0xff]
      %vm328 = vcmask 31744
      %v330 = vsel %vm328, %v315, 0
      %v333 = vsel %vm328, %v316, 0
      %v336 = vsel %vm328, %v317, 0
      %v339 = vsel %vm328, %v318, 0
      %v342 = vsel %vm328, %v319, 0
      %v345 = vsel %vm328, %v320, 0
      %v348 = vsel %vm328, %v321, 0
      %v351 = vsel %vm328, %v322, 0
      %v354 = vsel %vm328, %v323, 0
      %v357 = vsel %vm328, %v324, 0
      %v360 = vsel %vm328, %v325, 0
      %v363 = vsel %vm328, %v326, 0
      %v366 = vsel %vm328, %v327, 0
      %vm368 = vcmask 1043456
      %v370 = vsel %vm368, %v313, 0
      %v373 = vsel %vm368, %v314, 0
      %375 = vmatprep.subr.mxu0 %v373
      %376 = vmatpush1.msra.mxu0 %v370
      %377 = vmatprep.subr.mxu0 0.0
      %378 = vmatpush1.msra.mxu0 0.0
      %379 = vmatprep.subr.mxu0 0.0
      %380 = vmatpush1.msra.mxu0 0.0
      %381 = vmatprep.subr.mxu0 0.0
      %382 = vmatpush1.msra.mxu0 0.0
      %383 = vmatprep.subr.mxu0 0.0
      %384 = vmatpush1.msra.mxu0 0.0
      %385 = vmatprep.subr.mxu0 0.0
      %386 = vmatpush1.msra.mxu0 0.0
      %387 = vmatprep.subr.mxu0 0.0
      %388 = vmatpush1.msra.mxu0 0.0
      %389 = vmatprep.subr.mxu0 0.0
      %390 = vmatpush1.msra.mxu0 0.0
      %391 = vmatprep.subr.mxu0 0.0
      %392 = vmatpush1.msra.mxu0 0.0
      %393 = vmatprep.subr.mxu0 0.0
      %394 = vmatpush1.msra.mxu0 0.0
      %395 = vmatprep.subr.mxu0 0.0
      %396 = vmatpush1.msra.mxu0 0.0
      %397 = vmatprep.subr.mxu0 0.0
      %398 = vmatpush1.msra.mxu0 0.0
      %399 = vmatprep.subr.mxu0 0.0
      %400 = vmatpush1.msra.mxu0 0.0
      %401 = vmatprep.subr.mxu0 0.0
      %402 = vmatpush1.msra.mxu0 0.0
      %403 = vmatprep.subr.mxu0 0.0
      %404 = vmatpush1.msra.mxu0 0.0
      %405 = vmatprep.subr.mxu0 0.0
      %406 = vmatpush1.msra.mxu0 0.0
      %407 = vmatprep.subr.mxu0 0.0
      %408 = vmatpush1.msra.mxu0 0.0
      %409 = vmatprep.subr.mxu0 0.0
      %410 = vmatpush1.msra.mxu0 0.0
      %411 = vmatprep.subr.mxu0 0.0
      %412 = vmatpush1.msra.mxu0 0.0
      %413 = vmatprep.subr.mxu0 0.0
      %414 = vmatpush1.msra.mxu0 0.0
      %415 = vmatprep.subr.mxu0 0.0
      %416 = vmatpush1.msra.mxu0 0.0
      %417 = vmatprep.subr.mxu0 0.0
      %418 = vmatpush1.msra.mxu0 0.0
      %419 = vmatprep.subr.mxu0 0.0
      %420 = vmatpush1.msra.mxu0 0.0
      %421 = vmatprep.subr.mxu0 0.0
      %422 = vmatpush1.msra.mxu0 0.0
      %423 = vmatprep.subr.mxu0 0.0
      %424 = vmatpush1.msra.mxu0 0.0
      %425 = vmatprep.subr.mxu0 0.0
      %426 = vmatpush1.msra.mxu0 0.0
      %427 = vmatprep.subr.mxu0 0.0
      %428 = vmatpush1.msra.mxu0 0.0
      %429 = vmatprep.subr.mxu0 0.0
      %430 = vmatpush1.msra.mxu0 0.0
      %431 = vmatprep.subr.mxu0 0.0
      %432 = vmatpush1.msra.mxu0 0.0
      %433 = vmatprep.subr.mxu0 0.0
      %434 = vmatpush1.msra.mxu0 0.0
      %435 = vmatprep.subr.mxu0 0.0
      %436 = vmatpush1.msra.mxu0 0.0
      %437 = vmatprep.subr.mxu0 0.0
      %438 = vmatpush1.msra.mxu0 0.0
      %439 = vmatprep.mubr.f32.mxu0 0.0
      %440 = vmatmul.mubr.f32.gmra.mrb[0].mxu0 %v330
      %v441 = vpop.f32.mrb[0].mxu0
      %v442 = vadd.f32 0.0, %v441
      %v443 = vpop.f32.mrb[0].mxu0
      %v444 = vadd.f32 0.0, %v443
      %445 = vmatprep.mubr.f32.mxu0 0.0
      %446 = vmatmul.mubr.f32.gmra.mrb[0].mxu0 %v333
      %v447 = vpop.f32.mrb[0].mxu0
      %v448 = vadd.f32 0.0, %v447
      %v449 = vpop.f32.mrb[0].mxu0
      %v450 = vadd.f32 0.0, %v449
      %451 = vmatprep.mubr.f32.mxu0 0.0
      %452 = vmatmul.mubr.f32.gmra.mrb[0].mxu0 %v336
      %v453 = vpop.f32.mrb[0].mxu0
      %v454 = vadd.f32 0.0, %v453
      %v455 = vpop.f32.mrb[0].mxu0
      %v456 = vadd.f32 0.0, %v455
      %457 = vmatprep.mubr.f32.mxu0 0.0
      %458 = vmatmul.mubr.f32.gmra.mrb[0].mxu0 %v339
      %v459 = vpop.f32.mrb[0].mxu0
      %v460 = vadd.f32 0.0, %v459
      %v461 = vpop.f32.mrb[0].mxu0
      %v462 = vadd.f32 0.0, %v461
      %463 = vmatprep.mubr.f32.mxu0 0.0
      %464 = vmatmul.mubr.f32.gmra.mrb[0].mxu0 %v342
      %v465 = vpop.f32.mrb[0].mxu0
      %v466 = vadd.f32 0.0, %v465
      %v467 = vpop.f32.mrb[0].mxu0
      %v468 = vadd.f32 0.0, %v467
      %469 = vmatprep.mubr.f32.mxu0 0.0
      %470 = vmatmul.mubr.f32.gmra.mrb[0].mxu0 %v345
      %v471 = vpop.f32.mrb[0].mxu0
      %v472 = vadd.f32 0.0, %v471
      %v473 = vpop.f32.mrb[0].mxu0
      %v474 = vadd.f32 0.0, %v473
      %475 = vmatprep.mubr.f32.mxu0 0.0
      %476 = vmatmul.mubr.f32.gmra.mrb[0].mxu0 %v348
      %v477 = vpop.f32.mrb[0].mxu0
      %v478 = vadd.f32 0.0, %v477
      %v479 = vpop.f32.mrb[0].mxu0
      %v480 = vadd.f32 0.0, %v479
      %481 = vmatprep.mubr.f32.mxu0 0.0
      %482 = vmatmul.mubr.f32.gmra.mrb[0].mxu0 %v351
      %v483 = vpop.f32.mrb[0].mxu0
      %v484 = vadd.f32 0.0, %v483
      %v485 = vpop.f32.mrb[0].mxu0
      %v486 = vadd.f32 0.0, %v485
      %487 = vmatprep.mubr.f32.mxu0 0.0
      %488 = vmatmul.mubr.f32.gmra.mrb[0].mxu0 %v354
      %v489 = vpop.f32.mrb[0].mxu0
      %v490 = vadd.f32 0.0, %v489
      %v491 = vpop.f32.mrb[0].mxu0
      %v492 = vadd.f32 0.0, %v491
      %493 = vmatprep.mubr.f32.mxu0 0.0
      %494 = vmatmul.mubr.f32.gmra.mrb[0].mxu0 %v357
      %v495 = vpop.f32.mrb[0].mxu0
      %v496 = vadd.f32 0.0, %v495
      %v497 = vpop.f32.mrb[0].mxu0
      %v498 = vadd.f32 0.0, %v497
      %499 = vmatprep.mubr.f32.mxu0 0.0
      %500 = vmatmul.mubr.f32.gmra.mrb[0].mxu0 %v360
      %v501 = vpop.f32.mrb[0].mxu0
      %v502 = vadd.f32 0.0, %v501
      %v503 = vpop.f32.mrb[0].mxu0
      %v504 = vadd.f32 0.0, %v503
      %505 = vmatprep.mubr.f32.mxu0 0.0
      %506 = vmatmul.mubr.f32.gmra.mrb[0].mxu0 %v363
      %v507 = vpop.f32.mrb[0].mxu0
      %v508 = vadd.f32 0.0, %v507
      %v509 = vpop.f32.mrb[0].mxu0
      %v510 = vadd.f32 0.0, %v509
      %511 = vmatprep.mubr.f32.mxu0 0.0
      %512 = vmatmul.mubr.f32.gmra.mrb[0].mxu0 %v366
      %v513 = vpop.f32.mrb[0].mxu0
      %v514 = vadd.f32 0.0, %v513
      %v515 = vpop.f32.mrb[0].mxu0
      %v516 = vadd.f32 0.0, %v515
      %517 = vdwg.mxu0
      %v518 = vld [vmem:[%s4 + $0x10] sm:$0x3]
      %v519 = vld [vmem:[%s4 + $0x18] sm:$0x3]
      %v520 = vadd.f32 %v514, %v518
      %v521 = vadd.f32 %v516, %v519
      %v522 = vld [vmem:[%s2] sm:$0xff]
      %v523 = vld [vmem:[%s2 + $0x8] sm:$0xff]
      %v524 = vld [vmem:[%s2 + $0x10] sm:$0xff]
      %v525 = vld [vmem:[%s2 + $0x18] sm:$0xff]
      %v526 = vld [vmem:[%s2 + $0x20] sm:$0xff]
      %v527 = vld [vmem:[%s2 + $0x28] sm:$0xff]
      %v528 = vld [vmem:[%s2 + $0x30] sm:$0xff]
      %v529 = vld [vmem:[%s2 + $0x38] sm:$0xff]
      %v530 = vld [vmem:[%s2 + $0x40] sm:$0xff]
      %v531 = vld [vmem:[%s2 + $0x48] sm:$0xff]
      %v532 = vld [vmem:[%s2 + $0x50] sm:$0xff]
      %v533 = vld [vmem:[%s2 + $0x58] sm:$0xff]
      %v534 = vld [vmem:[%s2 + $0x60] sm:$0xff]
      %v535 = vld [vmem:[%s2 + $0x68] sm:$0xff]
      %v536 = vld [vmem:[%s2 + $0x70] sm:$0xff]
      %v537 = vld [vmem:[%s2 + $0x78] sm:$0xff]
      %v538 = vld [vmem:[%s2 + $0x80] sm:$0xff]
      %v539 = vld [vmem:[%s2 + $0x88] sm:$0xff]
      %v540 = vld [vmem:[%s2 + $0x90] sm:$0xff]
      %v541 = vld [vmem:[%s2 + $0x98] sm:$0xff]
      %v542 = vld [vmem:[%s2 + $0xa0] sm:$0xff]
      %v543 = vld [vmem:[%s2 + $0xa8] sm:$0xff]
      %v544 = vld [vmem:[%s2 + $0xb0] sm:$0xff]
      %v545 = vld [vmem:[%s2 + $0xb8] sm:$0xff]
      %v546 = vmul.f32 %v442, %v522
      %v547 = vmul.f32 %v444, %v523
      %v548 = vmul.f32 %v448, %v524
      %v549 = vmul.f32 %v450, %v525
      %v550 = vmul.f32 %v454, %v526
      %v551 = vmul.f32 %v456, %v527
      %v552 = vmul.f32 %v460, %v528
      %v553 = vmul.f32 %v462, %v529
      %v554 = vmul.f32 %v466, %v530
      %v555 = vmul.f32 %v468, %v531
      %v556 = vmul.f32 %v472, %v532
      %v557 = vmul.f32 %v474, %v533
      %v558 = vmul.f32 %v478, %v534
      %v559 = vmul.f32 %v480, %v535
      %v560 = vmul.f32 %v484, %v536
      %v561 = vmul.f32 %v486, %v537
      %v562 = vmul.f32 %v490, %v538
      %v563 = vmul.f32 %v492, %v539
      %v564 = vmul.f32 %v496, %v540
      %v565 = vmul.f32 %v498, %v541
      %v566 = vmul.f32 %v502, %v542
      %v567 = vmul.f32 %v504, %v543
      %v568 = vmul.f32 %v508, %v544
      %v569 = vmul.f32 %v510, %v545
      %570 = vmatprep.subr.mxu0 %v228
      %571 = vmatpush1.xpose.msra.mxu0 %v227
      %572 = vmatprep.subr.mxu0 %v230
      %573 = vmatpush1.xpose.msra.mxu0 %v229
      %574 = vmatprep.subr.mxu0 0.0
      %575 = vmatpush1.xpose.msra.mxu0 0.0
      %576 = vmatprep.subr.mxu0 0.0
      %577 = vmatpush1.xpose.msra.mxu0 0.0
      %578 = vmatprep.subr.mxu0 0.0
      %579 = vmatpush1.xpose.msra.mxu0 0.0
      %580 = vmatprep.subr.mxu0 0.0
      %581 = vmatpush1.xpose.msra.mxu0 0.0
      %582 = vmatprep.subr.mxu0 0.0
      %583 = vmatpush1.xpose.msra.mxu0 0.0
      %584 = vmatprep.subr.mxu0 0.0
      %585 = vmatpush1.xpose.msra.mxu0 0.0
      %586 = vmatprep.subr.mxu0 0.0
      %587 = vmatpush1.xpose.msra.mxu0 0.0
      %588 = vmatprep.subr.mxu0 0.0
      %589 = vmatpush1.xpose.msra.mxu0 0.0
      %590 = vmatprep.subr.mxu0 0.0
      %591 = vmatpush1.xpose.msra.mxu0 0.0
      %592 = vmatprep.subr.mxu0 0.0
      %593 = vmatpush1.xpose.msra.mxu0 0.0
      %594 = vmatprep.subr.mxu0 0.0
      %595 = vmatpush1.xpose.msra.mxu0 0.0
      %596 = vmatprep.subr.mxu0 0.0
      %597 = vmatpush1.xpose.msra.mxu0 0.0
      %598 = vmatprep.subr.mxu0 0.0
      %599 = vmatpush1.xpose.msra.mxu0 0.0
      %600 = vmatprep.subr.mxu0 0.0
      %601 = vmatpush1.xpose.msra.mxu0 0.0
      %602 = vmatprep.subr.mxu0 0.0
      %603 = vmatpush1.xpose.msra.mxu0 0.0
      %604 = vmatprep.subr.mxu0 0.0
      %605 = vmatpush1.xpose.msra.mxu0 0.0
      %606 = vmatprep.subr.mxu0 0.0
      %607 = vmatpush1.xpose.msra.mxu0 0.0
      %608 = vmatprep.subr.mxu0 0.0
      %609 = vmatpush1.xpose.msra.mxu0 0.0
      %610 = vmatprep.subr.mxu0 0.0
      %611 = vmatpush1.xpose.msra.mxu0 0.0
      %612 = vmatprep.subr.mxu0 0.0
      %613 = vmatpush1.xpose.msra.mxu0 0.0
      %614 = vmatprep.subr.mxu0 0.0
      %615 = vmatpush1.xpose.msra.mxu0 0.0
      %616 = vmatprep.subr.mxu0 0.0
      %617 = vmatpush1.xpose.msra.mxu0 0.0
      %618 = vmatprep.subr.mxu0 0.0
      %619 = vmatpush1.xpose.msra.mxu0 0.0
      %620 = vmatprep.subr.mxu0 0.0
      %621 = vmatpush1.xpose.msra.mxu0 0.0
      %622 = vmatprep.subr.mxu0 0.0
      %623 = vmatpush1.xpose.msra.mxu0 0.0
      %624 = vmatprep.subr.mxu0 0.0
      %625 = vmatpush1.xpose.msra.mxu0 0.0
      %626 = vmatprep.subr.mxu0 0.0
      %627 = vmatpush1.xpose.msra.mxu0 0.0
      %628 = vmatprep.subr.mxu0 0.0
      %629 = vmatpush1.xpose.msra.mxu0 0.0
      %630 = vmatprep.subr.mxu0 0.0
      %631 = vmatpush1.xpose.msra.mxu0 0.0
      %632 = vmatprep.subr.mxu0 0.0
      %633 = vmatpush1.xpose.msra.mxu0 0.0
      %634 = vmatprep.mubr.f32.mxu0 %v547
      %635 = vmatmul.mubr.f32.gmra.mrb[0].mxu0 %v546
      %v636 = vpop.f32.mrb[0].mxu0
      %v637 = vadd.f32 0.0, %v636
      %v638 = vpop.f32.mrb[0].mxu0
      %639 = vmatprep.mubr.f32.mxu0 %v549
      %640 = vmatmul.mubr.f32.gmra.mrb[0].mxu0 %v548
      %v641 = vpop.f32.mrb[0].mxu0
      %v642 = vadd.f32 0.0, %v641
      %v643 = vpop.f32.mrb[0].mxu0
      %644 = vmatprep.mubr.f32.mxu0 %v551
      %645 = vmatmul.mubr.f32.gmra.mrb[0].mxu0 %v550
      %v646 = vpop.f32.mrb[0].mxu0
      %v647 = vadd.f32 0.0, %v646
      %v648 = vpop.f32.mrb[0].mxu0
      %649 = vmatprep.mubr.f32.mxu0 %v553
      %650 = vmatmul.mubr.f32.gmra.mrb[0].mxu0 %v552
      %v651 = vpop.f32.mrb[0].mxu0
      %v652 = vadd.f32 0.0, %v651
      %v653 = vpop.f32.mrb[0].mxu0
      %654 = vmatprep.mubr.f32.mxu0 %v555
      %655 = vmatmul.mubr.f32.gmra.mrb[0].mxu0 %v554
      %v656 = vpop.f32.mrb[0].mxu0
      %v657 = vadd.f32 0.0, %v656
      %v658 = vpop.f32.mrb[0].mxu0
      %659 = vmatprep.mubr.f32.mxu0 %v557
      %660 = vmatmul.mubr.f32.gmra.mrb[0].mxu0 %v556
      %v661 = vpop.f32.mrb[0].mxu0
      %v662 = vadd.f32 0.0, %v661
      %v663 = vpop.f32.mrb[0].mxu0
      %664 = vmatprep.mubr.f32.mxu0 %v559
      %665 = vmatmul.mubr.f32.gmra.mrb[0].mxu0 %v558
      %v666 = vpop.f32.mrb[0].mxu0
      %v667 = vadd.f32 0.0, %v666
      %v668 = vpop.f32.mrb[0].mxu0
      %669 = vmatprep.mubr.f32.mxu0 %v561
      %670 = vmatmul.mubr.f32.gmra.mrb[0].mxu0 %v560
      %v671 = vpop.f32.mrb[0].mxu0
      %v672 = vadd.f32 0.0, %v671
      %v673 = vpop.f32.mrb[0].mxu0
      %674 = vmatprep.mubr.f32.mxu0 %v563
      %675 = vmatmul.mubr.f32.gmra.mrb[0].mxu0 %v562
      %v676 = vpop.f32.mrb[0].mxu0
      %v677 = vadd.f32 0.0, %v676
      %v678 = vpop.f32.mrb[0].mxu0
      %679 = vmatprep.mubr.f32.mxu0 %v565
      %680 = vmatmul.mubr.f32.gmra.mrb[0].mxu0 %v564
      %v681 = vpop.f32.mrb[0].mxu0
      %v682 = vadd.f32 0.0, %v681
      %v683 = vpop.f32.mrb[0].mxu0
      %684 = vmatprep.mubr.f32.mxu0 %v567
      %685 = vmatmul.mubr.f32.gmra.mrb[0].mxu0 %v566
      %v686 = vpop.f32.mrb[0].mxu0
      %v687 = vadd.f32 0.0, %v686
      %v688 = vpop.f32.mrb[0].mxu0
      %689 = vmatprep.mubr.f32.mxu0 %v569
      %690 = vmatmul.mubr.f32.gmra.mrb[0].mxu0 %v568
      %v691 = vpop.f32.mrb[0].mxu0
      %v692 = vadd.f32 0.0, %v691
      %v693 = vpop.f32.mrb[0].mxu0
      %694 = vdwg.mxu0
      %vm695 = vcmask 130048
      %v697 = vsel %vm695, %v637, 0
      %v700 = vsel %vm695, %v642, 0
      %v703 = vsel %vm695, %v647, 0
      %v706 = vsel %vm695, %v652, 0
      %v709 = vsel %vm695, %v657, 0
      %v712 = vsel %vm695, %v662, 0
      %v715 = vsel %vm695, %v667, 0
      %v718 = vsel %vm695, %v672, 0
      %v721 = vsel %vm695, %v677, 0
      %v724 = vsel %vm695, %v682, 0
      %v727 = vsel %vm695, %v687, 0
      %v730 = vsel %vm695, %v692, 0
      %732 = vmatprep.subr.mxu0 %v228
      %733 = vmatpush1.msra.mxu0 %v227
      %734 = vmatprep.subr.mxu0 %v230
      %735 = vmatpush1.msra.mxu0 %v229
      %736 = vmatprep.subr.mxu0 0.0
      %737 = vmatpush1.msra.mxu0 0.0
      %738 = vmatprep.subr.mxu0 0.0
      %739 = vmatpush1.msra.mxu0 0.0
      %740 = vmatprep.subr.mxu0 0.0
      %741 = vmatpush1.msra.mxu0 0.0
      %742 = vmatprep.subr.mxu0 0.0
      %743 = vmatpush1.msra.mxu0 0.0
      %744 = vmatprep.subr.mxu0 0.0
      %745 = vmatpush1.msra.mxu0 0.0
      %746 = vmatprep.subr.mxu0 0.0
      %747 = vmatpush1.msra.mxu0 0.0
      %748 = vmatprep.subr.mxu0 0.0
      %749 = vmatpush1.msra.mxu0 0.0
      %750 = vmatprep.subr.mxu0 0.0
      %751 = vmatpush1.msra.mxu0 0.0
      %752 = vmatprep.subr.mxu0 0.0
      %753 = vmatpush1.msra.mxu0 0.0
      %754 = vmatprep.subr.mxu0 0.0
      %755 = vmatpush1.msra.mxu0 0.0
      %756 = vmatprep.subr.mxu0 0.0
      %757 = vmatpush1.msra.mxu0 0.0
      %758 = vmatprep.subr.mxu0 0.0
      %759 = vmatpush1.msra.mxu0 0.0
      %760 = vmatprep.subr.mxu0 0.0
      %761 = vmatpush1.msra.mxu0 0.0
      %762 = vmatprep.subr.mxu0 0.0
      %763 = vmatpush1.msra.mxu0 0.0
      %764 = vmatprep.subr.mxu0 0.0
      %765 = vmatpush1.msra.mxu0 0.0
      %766 = vmatprep.subr.mxu0 0.0
      %767 = vmatpush1.msra.mxu0 0.0
      %768 = vmatprep.subr.mxu0 0.0
      %769 = vmatpush1.msra.mxu0 0.0
      %770 = vmatprep.subr.mxu0 0.0
      %771 = vmatpush1.msra.mxu0 0.0
      %772 = vmatprep.subr.mxu0 0.0
      %773 = vmatpush1.msra.mxu0 0.0
      %774 = vmatprep.subr.mxu0 0.0
      %775 = vmatpush1.msra.mxu0 0.0
      %776 = vmatprep.subr.mxu0 0.0
      %777 = vmatpush1.msra.mxu0 0.0
      %778 = vmatprep.subr.mxu0 0.0
      %779 = vmatpush1.msra.mxu0 0.0
      %780 = vmatprep.subr.mxu0 0.0
      %781 = vmatpush1.msra.mxu0 0.0
      %782 = vmatprep.subr.mxu0 0.0
      %783 = vmatpush1.msra.mxu0 0.0
      %784 = vmatprep.subr.mxu0 0.0
      %785 = vmatpush1.msra.mxu0 0.0
      %786 = vmatprep.subr.mxu0 0.0
      %787 = vmatpush1.msra.mxu0 0.0
      %788 = vmatprep.subr.mxu0 0.0
      %789 = vmatpush1.msra.mxu0 0.0
      %790 = vmatprep.subr.mxu0 0.0
      %791 = vmatpush1.msra.mxu0 0.0
      %792 = vmatprep.subr.mxu0 0.0
      %793 = vmatpush1.msra.mxu0 0.0
      %794 = vmatprep.subr.mxu0 0.0
      %795 = vmatpush1.msra.mxu0 0.0
      %796 = vmatprep.mubr.f32.mxu0 0.0
      %797 = vmatmul.mubr.f32.gmra.mrb[0].mxu0 %v697
      %v798 = vpop.f32.mrb[0].mxu0
      %v799 = vadd.f32 0.0, %v798
      %v800 = vpop.f32.mrb[0].mxu0
      %v801 = vadd.f32 0.0, %v800
      %802 = vmatprep.mubr.f32.mxu0 0.0
      %803 = vmatmul.mubr.f32.gmra.mrb[0].mxu0 %v700
      %v804 = vpop.f32.mrb[0].mxu0
      %v805 = vadd.f32 0.0, %v804
      %v806 = vpop.f32.mrb[0].mxu0
      %v807 = vadd.f32 0.0, %v806
      %808 = vmatprep.mubr.f32.mxu0 0.0
      %809 = vmatmul.mubr.f32.gmra.mrb[0].mxu0 %v703
      %v810 = vpop.f32.mrb[0].mxu0
      %v811 = vadd.f32 0.0, %v810
      %v812 = vpop.f32.mrb[0].mxu0
      %v813 = vadd.f32 0.0, %v812
      %814 = vmatprep.mubr.f32.mxu0 0.0
      %815 = vmatmul.mubr.f32.gmra.mrb[0].mxu0 %v706
      %v816 = vpop.f32.mrb[0].mxu0
      %v817 = vadd.f32 0.0, %v816
      %v818 = vpop.f32.mrb[0].mxu0
      %v819 = vadd.f32 0.0, %v818
      %820 = vmatprep.mubr.f32.mxu0 0.0
      %821 = vmatmul.mubr.f32.gmra.mrb[0].mxu0 %v709
      %v822 = vpop.f32.mrb[0].mxu0
      %v823 = vadd.f32 0.0, %v822
      %v824 = vpop.f32.mrb[0].mxu0
      %v825 = vadd.f32 0.0, %v824
      %826 = vmatprep.mubr.f32.mxu0 0.0
      %827 = vmatmul.mubr.f32.gmra.mrb[0].mxu0 %v712
      %v828 = vpop.f32.mrb[0].mxu0
      %v829 = vadd.f32 0.0, %v828
      %v830 = vpop.f32.mrb[0].mxu0
      %v831 = vadd.f32 0.0, %v830
      %832 = vmatprep.mubr.f32.mxu0 0.0
      %833 = vmatmul.mubr.f32.gmra.mrb[0].mxu0 %v715
      %v834 = vpop.f32.mrb[0].mxu0
      %v835 = vadd.f32 0.0, %v834
      %v836 = vpop.f32.mrb[0].mxu0
      %v837 = vadd.f32 0.0, %v836
      %838 = vmatprep.mubr.f32.mxu0 0.0
      %839 = vmatmul.mubr.f32.gmra.mrb[0].mxu0 %v718
      %v840 = vpop.f32.mrb[0].mxu0
      %v841 = vadd.f32 0.0, %v840
      %v842 = vpop.f32.mrb[0].mxu0
      %v843 = vadd.f32 0.0, %v842
      %844 = vmatprep.mubr.f32.mxu0 0.0
      %845 = vmatmul.mubr.f32.gmra.mrb[0].mxu0 %v721
      %v846 = vpop.f32.mrb[0].mxu0
      %v847 = vadd.f32 0.0, %v846
      %v848 = vpop.f32.mrb[0].mxu0
      %v849 = vadd.f32 0.0, %v848
      %850 = vmatprep.mubr.f32.mxu0 0.0
      %851 = vmatmul.mubr.f32.gmra.mrb[0].mxu0 %v724
      %v852 = vpop.f32.mrb[0].mxu0
      %v853 = vadd.f32 0.0, %v852
      %v854 = vpop.f32.mrb[0].mxu0
      %v855 = vadd.f32 0.0, %v854
      %856 = vmatprep.mubr.f32.mxu0 0.0
      %857 = vmatmul.mubr.f32.gmra.mrb[0].mxu0 %v727
      %v858 = vpop.f32.mrb[0].mxu0
      %v859 = vadd.f32 0.0, %v858
      %v860 = vpop.f32.mrb[0].mxu0
      %v861 = vadd.f32 0.0, %v860
      %862 = vmatprep.mubr.f32.mxu0 0.0
      %863 = vmatmul.mubr.f32.gmra.mrb[0].mxu0 %v730
      %v864 = vpop.f32.mrb[0].mxu0
      %v865 = vadd.f32 0.0, %v864
      %v866 = vpop.f32.mrb[0].mxu0
      %v867 = vadd.f32 0.0, %v866
      %868 = vdwg.mxu0
      %v869 = vlaneseq
      %v870 = vshrl.u32 %v869, 7
      %v871 = vsub.s32 0, %v870
      %v872 = vrot.slane %v520, %v871
      %v873 = vlaneseq
      %v874 = vshrl.u32 %v873, 7
      %v875 = vsub.s32 0, %v874
      %v876 = vrot.slane %v521, %v875
      %v877 = vmul.f32 %v872, %v799
      %v878 = vmul.f32 %v876, %v801
      %v879 = vmul.f32 %v872, %v805
      %v880 = vmul.f32 %v876, %v807
      %v881 = vlaneseq
      %v882 = vshrl.u32 %v881, 7
      %v883 = vsub.s32 1, %v882
      %v884 = vrot.slane %v520, %v883
      %v885 = vlaneseq
      %v886 = vshrl.u32 %v885, 7
      %v887 = vsub.s32 1, %v886
      %v888 = vrot.slane %v521, %v887
      %v889 = vmul.f32 %v884, %v811
      %v890 = vmul.f32 %v888, %v813
      %v891 = vmul.f32 %v884, %v817
      %v892 = vmul.f32 %v888, %v819
      %v893 = vadd.f32 %v877, %v889
      %v894 = vadd.f32 %v878, %v890
      %v895 = vadd.f32 %v879, %v891
      %v896 = vadd.f32 %v880, %v892
      %v897 = vmax.f32 %v893, %v895
      %v898 = vrot.slane %v897, 4
      %v899 = vmax.f32 %v897, %v898
      %v900 = vrot.slane %v899, 2
      %v901 = vmax.f32 %v899, %v900
      %v902 = vrot.slane %v901, 1
      %v903 = vmax.f32 %v901, %v902
      %v904 = vmax.f32 %v894, %v896
      %v905 = vrot.slane %v904, 4
      %v906 = vmax.f32 %v904, %v905
      %v907 = vrot.slane %v906, 2
      %v908 = vmax.f32 %v906, %v907
      %v909 = vrot.slane %v908, 1
      %v910 = vmax.f32 %v908, %v909
      %v911 = vsub.f32 %v893, %v903
      %v912 = vsub.f32 %v894, %v910
      %v913 = vsub.f32 %v895, %v903
      %v914 = vsub.f32 %v896, %v910
      %v915 = vmul.f32 %v911, 1.442695
      %v916 = vpow.pop %v915
      %v917 = vmul.f32 %v912, 1.442695
      %v918 = vpow.pop %v917
      %v919 = vmul.f32 %v913, 1.442695
      %v920 = vpow.pop %v919
      %v921 = vmul.f32 %v914, 1.442695
      %v922 = vpow.pop %v921
      %v923 = vadd.f32 %v916, %v920
      %v924 = vrot.slane %v923, 4
      %v925 = vadd.f32 %v923, %v924
      %v926 = vrot.slane %v925, 2
      %v927 = vadd.f32 %v925, %v926
      %v928 = vrot.slane %v927, 1
      %v929 = vadd.f32 %v927, %v928
      %v930 = vadd.f32 %v918, %v922
      %v931 = vrot.slane %v930, 4
      %v932 = vadd.f32 %v930, %v931
      %v933 = vrot.slane %v932, 2
      %v934 = vadd.f32 %v932, %v933
      %v935 = vrot.slane %v934, 1
      %v936 = vadd.f32 %v934, %v935
      %v937 = vrcp.pop %v929
      %v938 = vrcp.pop %v936
      %v939 = vmul.f32 %v916, %v937
      %v940 = vmul.f32 %v918, %v938
      %v941 = vmul.f32 %v920, %v937
      %v942 = vmul.f32 %v922, %v938
      %v943 = vmul.f32 %v939, %v823
      %v944 = vmul.f32 %v940, %v825
      %v945 = vmul.f32 %v941, %v829
      %v946 = vmul.f32 %v942, %v831
      %v947 = vadd.f32 %v943, %v945
      %v948 = vrot.slane %v947, 4
      %v949 = vadd.f32 %v947, %v948
      %v950 = vrot.slane %v949, 2
      %v951 = vadd.f32 %v949, %v950
      %v952 = vrot.slane %v951, 1
      %v953 = vadd.f32 %v951, %v952
      %v954 = vadd.f32 %v944, %v946
      %v955 = vrot.slane %v954, 4
      %v956 = vadd.f32 %v954, %v955
      %v957 = vrot.slane %v956, 2
      %v958 = vadd.f32 %v956, %v957
      %v959 = vrot.slane %v958, 1
      %v960 = vadd.f32 %v958, %v959
      %v961 = vmul.f32 %v939, %v835
      %v962 = vmul.f32 %v940, %v837
      %v963 = vmul.f32 %v941, %v841
      %v964 = vmul.f32 %v942, %v843
      %v965 = vadd.f32 %v961, %v963
      %v966 = vrot.slane %v965, 4
      %v967 = vadd.f32 %v965, %v966
      %v968 = vrot.slane %v967, 2
      %v969 = vadd.f32 %v967, %v968
      %v970 = vrot.slane %v969, 1
      %v971 = vadd.f32 %v969, %v970
      %v972 = vadd.f32 %v962, %v964
      %v973 = vrot.slane %v972, 4
      %v974 = vadd.f32 %v972, %v973
      %v975 = vrot.slane %v974, 2
      %v976 = vadd.f32 %v974, %v975
      %v977 = vrot.slane %v976, 1
      %v978 = vadd.f32 %v976, %v977
      %v979 = vmul.f32 %v939, %v847
      %v980 = vmul.f32 %v940, %v849
      %v981 = vmul.f32 %v941, %v853
      %v982 = vmul.f32 %v942, %v855
      %v983 = vadd.f32 %v979, %v981
      %v984 = vrot.slane %v983, 4
      %v985 = vadd.f32 %v983, %v984
      %v986 = vrot.slane %v985, 2
      %v987 = vadd.f32 %v985, %v986
      %v988 = vrot.slane %v987, 1
      %v989 = vadd.f32 %v987, %v988
      %v990 = vadd.f32 %v980, %v982
      %v991 = vrot.slane %v990, 4
      %v992 = vadd.f32 %v990, %v991
      %v993 = vrot.slane %v992, 2
      %v994 = vadd.f32 %v992, %v993
      %v995 = vrot.slane %v994, 1
      %v996 = vadd.f32 %v994, %v995
      %v997 = vmul.f32 %v939, %v859
      %v998 = vmul.f32 %v940, %v861
      %v999 = vmul.f32 %v941, %v865
      %v1000 = vmul.f32 %v942, %v867
      %v1001 = vadd.f32 %v997, %v999
      %v1002 = vrot.slane %v1001, 4
      %v1003 = vadd.f32 %v1001, %v1002
      %v1004 = vrot.slane %v1003, 2
      %v1005 = vadd.f32 %v1003, %v1004
      %v1006 = vrot.slane %v1005, 1
      %v1007 = vadd.f32 %v1005, %v1006
      %v1008 = vadd.f32 %v998, %v1000
      %v1009 = vrot.slane %v1008, 4
      %v1010 = vadd.f32 %v1008, %v1009
      %v1011 = vrot.slane %v1010, 2
      %v1012 = vadd.f32 %v1010, %v1011
      %v1013 = vrot.slane %v1012, 1
      %v1014 = vadd.f32 %v1012, %v1013
      %vm1015 = vcmask 1040384
      %v1016 = vsel %vm1015, %v953, %v971
      %v1017 = vsel %vm1015, %v960, %v978
      %vm1018 = vcmask 1041408
      %v1019 = vsel %vm1018, %v1016, %v989
      %v1020 = vsel %vm1018, %v1017, %v996
      %vm1021 = vcmask 1042432
      %v1022 = vsel %vm1021, %v1019, %v1007
      %v1023 = vsel %vm1021, %v1020, %v1014
      %v1024 = vld [vmem:[%s4 + $0x20] sm:$0xf]
      %v1025 = vld [vmem:[%s4 + $0x28] sm:$0xf]
      %v1026 = vadd.f32 %v1022, %v1024
      %v1027 = vadd.f32 %v1023, %v1025
      %v1028 = vld [vmem:[%s3 + $0x78] sm:$0xff]
      %v1029 = vld [vmem:[%s3 + $0x80] sm:$0xff]
      %v1030 = vld [vmem:[%s3 + $0x88] sm:$0xff]
      %v1031 = vld [vmem:[%s3 + $0x90] sm:$0xff]
      %v1032 = vld [vmem:[%s3 + $0x98] sm:$0xff]
      %v1033 = vld [vmem:[%s3 + $0xa0] sm:$0xff]
      %v1034 = vld [vmem:[%s3 + $0xa8] sm:$0xff]
      %v1035 = vld [vmem:[%s3 + $0xb0] sm:$0xff]
      %v1036 = vld [vmem:[%s3 + $0xb8] sm:$0xff]
      %v1037 = vld [vmem:[%s3 + $0xc0] sm:$0xff]
      %v1038 = vld [vmem:[%s3 + $0xc8] sm:$0xff]
      %v1039 = vld [vmem:[%s3 + $0xd0] sm:$0xff]
      %v1040 = vld [vmem:[%s3 + $0xd8] sm:$0xff]
      %v1042 = vsel %vm328, %v1028, 0
      %v1045 = vsel %vm328, %v1029, 0
      %v1048 = vsel %vm328, %v1030, 0
      %v1051 = vsel %vm328, %v1031, 0
      %v1054 = vsel %vm328, %v1032, 0
      %v1057 = vsel %vm328, %v1033, 0
      %v1060 = vsel %vm328, %v1034, 0
      %v1063 = vsel %vm328, %v1035, 0
      %v1066 = vsel %vm328, %v1036, 0
      %v1069 = vsel %vm328, %v1037, 0
      %v1072 = vsel %vm328, %v1038, 0
      %v1075 = vsel %vm328, %v1039, 0
      %v1078 = vsel %vm328, %v1040, 0
      %v1081 = vsel %vm368, %v1026, 0
      %v1084 = vsel %vm368, %v1027, 0
      %1086 = vmatprep.subr.mxu0 %v1084
      %1087 = vmatpush1.msra.mxu0 %v1081
      %1088 = vmatprep.subr.mxu0 0.0
      %1089 = vmatpush1.msra.mxu0 0.0
      %1090 = vmatprep.subr.mxu0 0.0
      %1091 = vmatpush1.msra.mxu0 0.0
      %1092 = vmatprep.subr.mxu0 0.0
      %1093 = vmatpush1.msra.mxu0 0.0
      %1094 = vmatprep.subr.mxu0 0.0
      %1095 = vmatpush1.msra.mxu0 0.0
      %1096 = vmatprep.subr.mxu0 0.0
      %1097 = vmatpush1.msra.mxu0 0.0
      %1098 = vmatprep.subr.mxu0 0.0
      %1099 = vmatpush1.msra.mxu0 0.0
      %1100 = vmatprep.subr.mxu0 0.0
      %1101 = vmatpush1.msra.mxu0 0.0
      %1102 = vmatprep.subr.mxu0 0.0
      %1103 = vmatpush1.msra.mxu0 0.0
      %1104 = vmatprep.subr.mxu0 0.0
      %1105 = vmatpush1.msra.mxu0 0.0
      %1106 = vmatprep.subr.mxu0 0.0
      %1107 = vmatpush1.msra.mxu0 0.0
      %1108 = vmatprep.subr.mxu0 0.0
      %1109 = vmatpush1.msra.mxu0 0.0
      %1110 = vmatprep.subr.mxu0 0.0
      %1111 = vmatpush1.msra.mxu0 0.0
      %1112 = vmatprep.subr.mxu0 0.0
      %1113 = vmatpush1.msra.mxu0 0.0
      %1114 = vmatprep.subr.mxu0 0.0
      %1115 = vmatpush1.msra.mxu0 0.0
      %1116 = vmatprep.subr.mxu0 0.0
      %1117 = vmatpush1.msra.mxu0 0.0
      %1118 = vmatprep.subr.mxu0 0.0
      %1119 = vmatpush1.msra.mxu0 0.0
      %1120 = vmatprep.subr.mxu0 0.0
      %1121 = vmatpush1.msra.mxu0 0.0
      %1122 = vmatprep.subr.mxu0 0.0
      %1123 = vmatpush1.msra.mxu0 0.0
      %1124 = vmatprep.subr.mxu0 0.0
      %1125 = vmatpush1.msra.mxu0 0.0
      %1126 = vmatprep.subr.mxu0 0.0
      %1127 = vmatpush1.msra.mxu0 0.0
      %1128 = vmatprep.subr.mxu0 0.0
      %1129 = vmatpush1.msra.mxu0 0.0
      %1130 = vmatprep.subr.mxu0 0.0
      %1131 = vmatpush1.msra.mxu0 0.0
      %1132 = vmatprep.subr.mxu0 0.0
      %1133 = vmatpush1.msra.mxu0 0.0
      %1134 = vmatprep.subr.mxu0 0.0
      %1135 = vmatpush1.msra.mxu0 0.0
      %1136 = vmatprep.subr.mxu0 0.0
      %1137 = vmatpush1.msra.mxu0 0.0
      %1138 = vmatprep.subr.mxu0 0.0
      %1139 = vmatpush1.msra.mxu0 0.0
      %1140 = vmatprep.subr.mxu0 0.0
      %1141 = vmatpush1.msra.mxu0 0.0
      %1142 = vmatprep.subr.mxu0 0.0
      %1143 = vmatpush1.msra.mxu0 0.0
      %1144 = vmatprep.subr.mxu0 0.0
      %1145 = vmatpush1.msra.mxu0 0.0
      %1146 = vmatprep.subr.mxu0 0.0
      %1147 = vmatpush1.msra.mxu0 0.0
      %1148 = vmatprep.subr.mxu0 0.0
      %1149 = vmatpush1.msra.mxu0 0.0
      %1150 = vmatprep.mubr.f32.mxu0 0.0
      %1151 = vmatmul.mubr.f32.gmra.mrb[0].mxu0 %v1042
      %v1152 = vpop.f32.mrb[0].mxu0
      %v1153 = vadd.f32 0.0, %v1152
      %v1154 = vpop.f32.mrb[0].mxu0
      %v1155 = vadd.f32 0.0, %v1154
      %1156 = vmatprep.mubr.f32.mxu0 0.0
      %1157 = vmatmul.mubr.f32.gmra.mrb[0].mxu0 %v1045
      %v1158 = vpop.f32.mrb[0].mxu0
      %v1159 = vadd.f32 0.0, %v1158
      %v1160 = vpop.f32.mrb[0].mxu0
      %v1161 = vadd.f32 0.0, %v1160
      %1162 = vmatprep.mubr.f32.mxu0 0.0
      %1163 = vmatmul.mubr.f32.gmra.mrb[0].mxu0 %v1048
      %v1164 = vpop.f32.mrb[0].mxu0
      %v1165 = vadd.f32 0.0, %v1164
      %v1166 = vpop.f32.mrb[0].mxu0
      %v1167 = vadd.f32 0.0, %v1166
      %1168 = vmatprep.mubr.f32.mxu0 0.0
      %1169 = vmatmul.mubr.f32.gmra.mrb[0].mxu0 %v1051
      %v1170 = vpop.f32.mrb[0].mxu0
      %v1171 = vadd.f32 0.0, %v1170
      %v1172 = vpop.f32.mrb[0].mxu0
      %v1173 = vadd.f32 0.0, %v1172
      %1174 = vmatprep.mubr.f32.mxu0 0.0
      %1175 = vmatmul.mubr.f32.gmra.mrb[0].mxu0 %v1054
      %v1176 = vpop.f32.mrb[0].mxu0
      %v1177 = vadd.f32 0.0, %v1176
      %v1178 = vpop.f32.mrb[0].mxu0
      %v1179 = vadd.f32 0.0, %v1178
      %1180 = vmatprep.mubr.f32.mxu0 0.0
      %1181 = vmatmul.mubr.f32.gmra.mrb[0].mxu0 %v1057
      %v1182 = vpop.f32.mrb[0].mxu0
      %v1183 = vadd.f32 0.0, %v1182
      %v1184 = vpop.f32.mrb[0].mxu0
      %v1185 = vadd.f32 0.0, %v1184
      %1186 = vmatprep.mubr.f32.mxu0 0.0
      %1187 = vmatmul.mubr.f32.gmra.mrb[0].mxu0 %v1060
      %v1188 = vpop.f32.mrb[0].mxu0
      %v1189 = vadd.f32 0.0, %v1188
      %v1190 = vpop.f32.mrb[0].mxu0
      %v1191 = vadd.f32 0.0, %v1190
      %1192 = vmatprep.mubr.f32.mxu0 0.0
      %1193 = vmatmul.mubr.f32.gmra.mrb[0].mxu0 %v1063
      %v1194 = vpop.f32.mrb[0].mxu0
      %v1195 = vadd.f32 0.0, %v1194
      %v1196 = vpop.f32.mrb[0].mxu0
      %v1197 = vadd.f32 0.0, %v1196
      %1198 = vmatprep.mubr.f32.mxu0 0.0
      %1199 = vmatmul.mubr.f32.gmra.mrb[0].mxu0 %v1066
      %v1200 = vpop.f32.mrb[0].mxu0
      %v1201 = vadd.f32 0.0, %v1200
      %v1202 = vpop.f32.mrb[0].mxu0
      %v1203 = vadd.f32 0.0, %v1202
      %1204 = vmatprep.mubr.f32.mxu0 0.0
      %1205 = vmatmul.mubr.f32.gmra.mrb[0].mxu0 %v1069
      %v1206 = vpop.f32.mrb[0].mxu0
      %v1207 = vadd.f32 0.0, %v1206
      %v1208 = vpop.f32.mrb[0].mxu0
      %v1209 = vadd.f32 0.0, %v1208
      %1210 = vmatprep.mubr.f32.mxu0 0.0
      %1211 = vmatmul.mubr.f32.gmra.mrb[0].mxu0 %v1072
      %v1212 = vpop.f32.mrb[0].mxu0
      %v1213 = vadd.f32 0.0, %v1212
      %v1214 = vpop.f32.mrb[0].mxu0
      %v1215 = vadd.f32 0.0, %v1214
      %1216 = vmatprep.mubr.f32.mxu0 0.0
      %1217 = vmatmul.mubr.f32.gmra.mrb[0].mxu0 %v1075
      %v1218 = vpop.f32.mrb[0].mxu0
      %v1219 = vadd.f32 0.0, %v1218
      %v1220 = vpop.f32.mrb[0].mxu0
      %v1221 = vadd.f32 0.0, %v1220
      %1222 = vmatprep.mubr.f32.mxu0 0.0
      %1223 = vmatmul.mubr.f32.gmra.mrb[0].mxu0 %v1078
      %v1224 = vpop.f32.mrb[0].mxu0
      %v1225 = vadd.f32 0.0, %v1224
      %v1226 = vpop.f32.mrb[0].mxu0
      %v1227 = vadd.f32 0.0, %v1226
      %1228 = vdwg.mxu0
      %v1229 = vld [vmem:[%s4 + $0x30] sm:$0x3]
      %v1230 = vld [vmem:[%s4 + $0x38] sm:$0x3]
      %v1231 = vadd.f32 %v1225, %v1229
      %v1232 = vadd.f32 %v1227, %v1230
      %v1233 = vld [vmem:[%s1] sm:$0xff]
      %v1234 = vld [vmem:[%s1 + $0x8] sm:$0xff]
      %v1235 = vld [vmem:[%s1 + $0x10] sm:$0xff]
      %v1236 = vld [vmem:[%s1 + $0x18] sm:$0xff]
      %v1237 = vld [vmem:[%s1 + $0x20] sm:$0xff]
      %v1238 = vld [vmem:[%s1 + $0x28] sm:$0xff]
      %v1239 = vld [vmem:[%s1 + $0x30] sm:$0xff]
      %v1240 = vld [vmem:[%s1 + $0x38] sm:$0xff]
      %v1241 = vld [vmem:[%s1 + $0x40] sm:$0xff]
      %v1242 = vld [vmem:[%s1 + $0x48] sm:$0xff]
      %v1243 = vld [vmem:[%s1 + $0x50] sm:$0xff]
      %v1244 = vld [vmem:[%s1 + $0x58] sm:$0xff]
      %v1245 = vld [vmem:[%s1 + $0x60] sm:$0xff]
      %v1246 = vld [vmem:[%s1 + $0x68] sm:$0xff]
      %v1247 = vld [vmem:[%s1 + $0x70] sm:$0xff]
      %v1248 = vld [vmem:[%s1 + $0x78] sm:$0xff]
      %v1249 = vld [vmem:[%s1 + $0x80] sm:$0xff]
      %v1250 = vld [vmem:[%s1 + $0x88] sm:$0xff]
      %v1251 = vld [vmem:[%s1 + $0x90] sm:$0xff]
      %v1252 = vld [vmem:[%s1 + $0x98] sm:$0xff]
      %v1253 = vld [vmem:[%s1 + $0xa0] sm:$0xff]
      %v1254 = vld [vmem:[%s1 + $0xa8] sm:$0xff]
      %v1255 = vld [vmem:[%s1 + $0xb0] sm:$0xff]
      %v1256 = vld [vmem:[%s1 + $0xb8] sm:$0xff]
      %v1257 = vmul.f32 %v1153, %v1233
      %v1258 = vmul.f32 %v1155, %v1234
      %v1259 = vmul.f32 %v1159, %v1235
      %v1260 = vmul.f32 %v1161, %v1236
      %v1261 = vmul.f32 %v1165, %v1237
      %v1262 = vmul.f32 %v1167, %v1238
      %v1263 = vmul.f32 %v1171, %v1239
      %v1264 = vmul.f32 %v1173, %v1240
      %v1265 = vmul.f32 %v1177, %v1241
      %v1266 = vmul.f32 %v1179, %v1242
      %v1267 = vmul.f32 %v1183, %v1243
      %v1268 = vmul.f32 %v1185, %v1244
      %v1269 = vmul.f32 %v1189, %v1245
      %v1270 = vmul.f32 %v1191, %v1246
      %v1271 = vmul.f32 %v1195, %v1247
      %v1272 = vmul.f32 %v1197, %v1248
      %v1273 = vmul.f32 %v1201, %v1249
      %v1274 = vmul.f32 %v1203, %v1250
      %v1275 = vmul.f32 %v1207, %v1251
      %v1276 = vmul.f32 %v1209, %v1252
      %v1277 = vmul.f32 %v1213, %v1253
      %v1278 = vmul.f32 %v1215, %v1254
      %v1279 = vmul.f32 %v1219, %v1255
      %v1280 = vmul.f32 %v1221, %v1256
      %1281 = vmatprep.subr.mxu0 %v232
      %1282 = vmatpush1.xpose.msra.mxu0 %v231
      %1283 = vmatprep.subr.mxu0 %v234
      %1284 = vmatpush1.xpose.msra.mxu0 %v233
      %1285 = vmatprep.subr.mxu0 0.0
      %1286 = vmatpush1.xpose.msra.mxu0 0.0
      %1287 = vmatprep.subr.mxu0 0.0
      %1288 = vmatpush1.xpose.msra.mxu0 0.0
      %1289 = vmatprep.subr.mxu0 0.0
      %1290 = vmatpush1.xpose.msra.mxu0 0.0
      %1291 = vmatprep.subr.mxu0 0.0
      %1292 = vmatpush1.xpose.msra.mxu0 0.0
      %1293 = vmatprep.subr.mxu0 0.0
      %1294 = vmatpush1.xpose.msra.mxu0 0.0
      %1295 = vmatprep.subr.mxu0 0.0
      %1296 = vmatpush1.xpose.msra.mxu0 0.0
      %1297 = vmatprep.subr.mxu0 0.0
      %1298 = vmatpush1.xpose.msra.mxu0 0.0
      %1299 = vmatprep.subr.mxu0 0.0
      %1300 = vmatpush1.xpose.msra.mxu0 0.0
      %1301 = vmatprep.subr.mxu0 0.0
      %1302 = vmatpush1.xpose.msra.mxu0 0.0
      %1303 = vmatprep.subr.mxu0 0.0
      %1304 = vmatpush1.xpose.msra.mxu0 0.0
      %1305 = vmatprep.subr.mxu0 0.0
      %1306 = vmatpush1.xpose.msra.mxu0 0.0
      %1307 = vmatprep.subr.mxu0 0.0
      %1308 = vmatpush1.xpose.msra.mxu0 0.0
      %1309 = vmatprep.subr.mxu0 0.0
      %1310 = vmatpush1.xpose.msra.mxu0 0.0
      %1311 = vmatprep.subr.mxu0 0.0
      %1312 = vmatpush1.xpose.msra.mxu0 0.0
      %1313 = vmatprep.subr.mxu0 0.0
      %1314 = vmatpush1.xpose.msra.mxu0 0.0
      %1315 = vmatprep.subr.mxu0 0.0
      %1316 = vmatpush1.xpose.msra.mxu0 0.0
      %1317 = vmatprep.subr.mxu0 0.0
      %1318 = vmatpush1.xpose.msra.mxu0 0.0
      %1319 = vmatprep.subr.mxu0 0.0
      %1320 = vmatpush1.xpose.msra.mxu0 0.0
      %1321 = vmatprep.subr.mxu0 0.0
      %1322 = vmatpush1.xpose.msra.mxu0 0.0
      %1323 = vmatprep.subr.mxu0 0.0
      %1324 = vmatpush1.xpose.msra.mxu0 0.0
      %1325 = vmatprep.subr.mxu0 0.0
      %1326 = vmatpush1.xpose.msra.mxu0 0.0
      %1327 = vmatprep.subr.mxu0 0.0
      %1328 = vmatpush1.xpose.msra.mxu0 0.0
      %1329 = vmatprep.subr.mxu0 0.0
      %1330 = vmatpush1.xpose.msra.mxu0 0.0
      %1331 = vmatprep.subr.mxu0 0.0
      %1332 = vmatpush1.xpose.msra.mxu0 0.0
      %1333 = vmatprep.subr.mxu0 0.0
      %1334 = vmatpush1.xpose.msra.mxu0 0.0
      %1335 = vmatprep.subr.mxu0 0.0
      %1336 = vmatpush1.xpose.msra.mxu0 0.0
      %1337 = vmatprep.subr.mxu0 0.0
      %1338 = vmatpush1.xpose.msra.mxu0 0.0
      %1339 = vmatprep.subr.mxu0 0.0
      %1340 = vmatpush1.xpose.msra.mxu0 0.0
      %1341 = vmatprep.subr.mxu0 0.0
      %1342 = vmatpush1.xpose.msra.mxu0 0.0
      %1343 = vmatprep.subr.mxu0 0.0
      %1344 = vmatpush1.xpose.msra.mxu0 0.0
      %1345 = vmatprep.mubr.f32.mxu0 %v1258
      %1346 = vmatmul.mubr.f32.gmra.mrb[0].mxu0 %v1257
      %v1347 = vpop.f32.mrb[0].mxu0
      %v1348 = vadd.f32 0.0, %v1347
      %v1349 = vpop.f32.mrb[0].mxu0
      %1350 = vmatprep.mubr.f32.mxu0 %v1260
      %1351 = vmatmul.mubr.f32.gmra.mrb[0].mxu0 %v1259
      %v1352 = vpop.f32.mrb[0].mxu0
      %v1353 = vadd.f32 0.0, %v1352
      %v1354 = vpop.f32.mrb[0].mxu0
      %1355 = vmatprep.mubr.f32.mxu0 %v1262
      %1356 = vmatmul.mubr.f32.gmra.mrb[0].mxu0 %v1261
      %v1357 = vpop.f32.mrb[0].mxu0
      %v1358 = vadd.f32 0.0, %v1357
      %v1359 = vpop.f32.mrb[0].mxu0
      %1360 = vmatprep.mubr.f32.mxu0 %v1264
      %1361 = vmatmul.mubr.f32.gmra.mrb[0].mxu0 %v1263
      %v1362 = vpop.f32.mrb[0].mxu0
      %v1363 = vadd.f32 0.0, %v1362
      %v1364 = vpop.f32.mrb[0].mxu0
      %1365 = vmatprep.mubr.f32.mxu0 %v1266
      %1366 = vmatmul.mubr.f32.gmra.mrb[0].mxu0 %v1265
      %v1367 = vpop.f32.mrb[0].mxu0
      %v1368 = vadd.f32 0.0, %v1367
      %v1369 = vpop.f32.mrb[0].mxu0
      %1370 = vmatprep.mubr.f32.mxu0 %v1268
      %1371 = vmatmul.mubr.f32.gmra.mrb[0].mxu0 %v1267
      %v1372 = vpop.f32.mrb[0].mxu0
      %v1373 = vadd.f32 0.0, %v1372
      %v1374 = vpop.f32.mrb[0].mxu0
      %1375 = vmatprep.mubr.f32.mxu0 %v1270
      %1376 = vmatmul.mubr.f32.gmra.mrb[0].mxu0 %v1269
      %v1377 = vpop.f32.mrb[0].mxu0
      %v1378 = vadd.f32 0.0, %v1377
      %v1379 = vpop.f32.mrb[0].mxu0
      %1380 = vmatprep.mubr.f32.mxu0 %v1272
      %1381 = vmatmul.mubr.f32.gmra.mrb[0].mxu0 %v1271
      %v1382 = vpop.f32.mrb[0].mxu0
      %v1383 = vadd.f32 0.0, %v1382
      %v1384 = vpop.f32.mrb[0].mxu0
      %1385 = vmatprep.mubr.f32.mxu0 %v1274
      %1386 = vmatmul.mubr.f32.gmra.mrb[0].mxu0 %v1273
      %v1387 = vpop.f32.mrb[0].mxu0
      %v1388 = vadd.f32 0.0, %v1387
      %v1389 = vpop.f32.mrb[0].mxu0
      %1390 = vmatprep.mubr.f32.mxu0 %v1276
      %1391 = vmatmul.mubr.f32.gmra.mrb[0].mxu0 %v1275
      %v1392 = vpop.f32.mrb[0].mxu0
      %v1393 = vadd.f32 0.0, %v1392
      %v1394 = vpop.f32.mrb[0].mxu0
      %1395 = vmatprep.mubr.f32.mxu0 %v1278
      %1396 = vmatmul.mubr.f32.gmra.mrb[0].mxu0 %v1277
      %v1397 = vpop.f32.mrb[0].mxu0
      %v1398 = vadd.f32 0.0, %v1397
      %v1399 = vpop.f32.mrb[0].mxu0
      %1400 = vmatprep.mubr.f32.mxu0 %v1280
      %1401 = vmatmul.mubr.f32.gmra.mrb[0].mxu0 %v1279
      %v1402 = vpop.f32.mrb[0].mxu0
      %v1403 = vadd.f32 0.0, %v1402
      %v1404 = vpop.f32.mrb[0].mxu0
      %1405 = vdwg.mxu0
      %v1407 = vsel %vm695, %v1348, 0
      %v1410 = vsel %vm695, %v1353, 0
      %v1413 = vsel %vm695, %v1358, 0
      %v1416 = vsel %vm695, %v1363, 0
      %v1419 = vsel %vm695, %v1368, 0
      %v1422 = vsel %vm695, %v1373, 0
      %v1425 = vsel %vm695, %v1378, 0
      %v1428 = vsel %vm695, %v1383, 0
      %v1431 = vsel %vm695, %v1388, 0
      %v1434 = vsel %vm695, %v1393, 0
      %v1437 = vsel %vm695, %v1398, 0
      %v1440 = vsel %vm695, %v1403, 0
      %1442 = vmatprep.subr.mxu0 %v232
      %1443 = vmatpush1.msra.mxu0 %v231
      %1444 = vmatprep.subr.mxu0 %v234
      %1445 = vmatpush1.msra.mxu0 %v233
      %1446 = vmatprep.subr.mxu0 0.0
      %1447 = vmatpush1.msra.mxu0 0.0
      %1448 = vmatprep.subr.mxu0 0.0
      %1449 = vmatpush1.msra.mxu0 0.0
      %1450 = vmatprep.subr.mxu0 0.0
      %1451 = vmatpush1.msra.mxu0 0.0
      %1452 = vmatprep.subr.mxu0 0.0
      %1453 = vmatpush1.msra.mxu0 0.0
      %1454 = vmatprep.subr.mxu0 0.0
      %1455 = vmatpush1.msra.mxu0 0.0
      %1456 = vmatprep.subr.mxu0 0.0
      %1457 = vmatpush1.msra.mxu0 0.0
      %1458 = vmatprep.subr.mxu0 0.0
      %1459 = vmatpush1.msra.mxu0 0.0
      %1460 = vmatprep.subr.mxu0 0.0
      %1461 = vmatpush1.msra.mxu0 0.0
      %1462 = vmatprep.subr.mxu0 0.0
      %1463 = vmatpush1.msra.mxu0 0.0
      %1464 = vmatprep.subr.mxu0 0.0
      %1465 = vmatpush1.msra.mxu0 0.0
      %1466 = vmatprep.subr.mxu0 0.0
      %1467 = vmatpush1.msra.mxu0 0.0
      %1468 = vmatprep.subr.mxu0 0.0
      %1469 = vmatpush1.msra.mxu0 0.0
      %1470 = vmatprep.subr.mxu0 0.0
      %1471 = vmatpush1.msra.mxu0 0.0
      %1472 = vmatprep.subr.mxu0 0.0
      %1473 = vmatpush1.msra.mxu0 0.0
      %1474 = vmatprep.subr.mxu0 0.0
      %1475 = vmatpush1.msra.mxu0 0.0
      %1476 = vmatprep.subr.mxu0 0.0
      %1477 = vmatpush1.msra.mxu0 0.0
      %1478 = vmatprep.subr.mxu0 0.0
      %1479 = vmatpush1.msra.mxu0 0.0
      %1480 = vmatprep.subr.mxu0 0.0
      %1481 = vmatpush1.msra.mxu0 0.0
      %1482 = vmatprep.subr.mxu0 0.0
      %1483 = vmatpush1.msra.mxu0 0.0
      %1484 = vmatprep.subr.mxu0 0.0
      %1485 = vmatpush1.msra.mxu0 0.0
      %1486 = vmatprep.subr.mxu0 0.0
      %1487 = vmatpush1.msra.mxu0 0.0
      %1488 = vmatprep.subr.mxu0 0.0
      %1489 = vmatpush1.msra.mxu0 0.0
      %1490 = vmatprep.subr.mxu0 0.0
      %1491 = vmatpush1.msra.mxu0 0.0
      %1492 = vmatprep.subr.mxu0 0.0
      %1493 = vmatpush1.msra.mxu0 0.0
      %1494 = vmatprep.subr.mxu0 0.0
      %1495 = vmatpush1.msra.mxu0 0.0
      %1496 = vmatprep.subr.mxu0 0.0
      %1497 = vmatpush1.msra.mxu0 0.0
      %1498 = vmatprep.subr.mxu0 0.0
      %1499 = vmatpush1.msra.mxu0 0.0
      %1500 = vmatprep.subr.mxu0 0.0
      %1501 = vmatpush1.msra.mxu0 0.0
      %1502 = vmatprep.subr.mxu0 0.0
      %1503 = vmatpush1.msra.mxu0 0.0
      %1504 = vmatprep.subr.mxu0 0.0
      %1505 = vmatpush1.msra.mxu0 0.0
      %1506 = vmatprep.mubr.f32.mxu0 0.0
      %1507 = vmatmul.mubr.f32.gmra.mrb[0].mxu0 %v1407
      %v1508 = vpop.f32.mrb[0].mxu0
      %v1509 = vadd.f32 0.0, %v1508
      %v1510 = vpop.f32.mrb[0].mxu0
      %v1511 = vadd.f32 0.0, %v1510
      %1512 = vmatprep.mubr.f32.mxu0 0.0
      %1513 = vmatmul.mubr.f32.gmra.mrb[0].mxu0 %v1410
      %v1514 = vpop.f32.mrb[0].mxu0
      %v1515 = vadd.f32 0.0, %v1514
      %v1516 = vpop.f32.mrb[0].mxu0
      %v1517 = vadd.f32 0.0, %v1516
      %1518 = vmatprep.mubr.f32.mxu0 0.0
      %1519 = vmatmul.mubr.f32.gmra.mrb[0].mxu0 %v1413
      %v1520 = vpop.f32.mrb[0].mxu0
      %v1521 = vadd.f32 0.0, %v1520
      %v1522 = vpop.f32.mrb[0].mxu0
      %v1523 = vadd.f32 0.0, %v1522
      %1524 = vmatprep.mubr.f32.mxu0 0.0
      %1525 = vmatmul.mubr.f32.gmra.mrb[0].mxu0 %v1416
      %v1526 = vpop.f32.mrb[0].mxu0
      %v1527 = vadd.f32 0.0, %v1526
      %v1528 = vpop.f32.mrb[0].mxu0
      %v1529 = vadd.f32 0.0, %v1528
      %1530 = vmatprep.mubr.f32.mxu0 0.0
      %1531 = vmatmul.mubr.f32.gmra.mrb[0].mxu0 %v1419
      %v1532 = vpop.f32.mrb[0].mxu0
      %v1533 = vadd.f32 0.0, %v1532
      %v1534 = vpop.f32.mrb[0].mxu0
      %v1535 = vadd.f32 0.0, %v1534
      %1536 = vmatprep.mubr.f32.mxu0 0.0
      %1537 = vmatmul.mubr.f32.gmra.mrb[0].mxu0 %v1422
      %v1538 = vpop.f32.mrb[0].mxu0
      %v1539 = vadd.f32 0.0, %v1538
      %v1540 = vpop.f32.mrb[0].mxu0
      %v1541 = vadd.f32 0.0, %v1540
      %1542 = vmatprep.mubr.f32.mxu0 0.0
      %1543 = vmatmul.mubr.f32.gmra.mrb[0].mxu0 %v1425
      %v1544 = vpop.f32.mrb[0].mxu0
      %v1545 = vadd.f32 0.0, %v1544
      %v1546 = vpop.f32.mrb[0].mxu0
      %v1547 = vadd.f32 0.0, %v1546
      %1548 = vmatprep.mubr.f32.mxu0 0.0
      %1549 = vmatmul.mubr.f32.gmra.mrb[0].mxu0 %v1428
      %v1550 = vpop.f32.mrb[0].mxu0
      %v1551 = vadd.f32 0.0, %v1550
      %v1552 = vpop.f32.mrb[0].mxu0
      %v1553 = vadd.f32 0.0, %v1552
      %1554 = vmatprep.mubr.f32.mxu0 0.0
      %1555 = vmatmul.mubr.f32.gmra.mrb[0].mxu0 %v1431
      %v1556 = vpop.f32.mrb[0].mxu0
      %v1557 = vadd.f32 0.0, %v1556
      %v1558 = vpop.f32.mrb[0].mxu0
      %v1559 = vadd.f32 0.0, %v1558
      %1560 = vmatprep.mubr.f32.mxu0 0.0
      %1561 = vmatmul.mubr.f32.gmra.mrb[0].mxu0 %v1434
      %v1562 = vpop.f32.mrb[0].mxu0
      %v1563 = vadd.f32 0.0, %v1562
      %v1564 = vpop.f32.mrb[0].mxu0
      %v1565 = vadd.f32 0.0, %v1564
      %1566 = vmatprep.mubr.f32.mxu0 0.0
      %1567 = vmatmul.mubr.f32.gmra.mrb[0].mxu0 %v1437
      %v1568 = vpop.f32.mrb[0].mxu0
      %v1569 = vadd.f32 0.0, %v1568
      %v1570 = vpop.f32.mrb[0].mxu0
      %v1571 = vadd.f32 0.0, %v1570
      %1572 = vmatprep.mubr.f32.mxu0 0.0
      %1573 = vmatmul.mubr.f32.gmra.mrb[0].mxu0 %v1440
      %v1574 = vpop.f32.mrb[0].mxu0
      %v1575 = vadd.f32 0.0, %v1574
      %v1576 = vpop.f32.mrb[0].mxu0
      %v1577 = vadd.f32 0.0, %v1576
      %1578 = vdwg.mxu0
      %v1579 = vlaneseq
      %v1580 = vshrl.u32 %v1579, 7
      %v1581 = vsub.s32 0, %v1580
      %v1582 = vrot.slane %v1231, %v1581
      %v1583 = vlaneseq
      %v1584 = vshrl.u32 %v1583, 7
      %v1585 = vsub.s32 0, %v1584
      %v1586 = vrot.slane %v1232, %v1585
      %v1587 = vmul.f32 %v1582, %v1509
      %v1588 = vmul.f32 %v1586, %v1511
      %v1589 = vmul.f32 %v1582, %v1515
      %v1590 = vmul.f32 %v1586, %v1517
      %v1591 = vlaneseq
      %v1592 = vshrl.u32 %v1591, 7
      %v1593 = vsub.s32 1, %v1592
      %v1594 = vrot.slane %v1231, %v1593
      %v1595 = vlaneseq
      %v1596 = vshrl.u32 %v1595, 7
      %v1597 = vsub.s32 1, %v1596
      %v1598 = vrot.slane %v1232, %v1597
      %v1599 = vmul.f32 %v1594, %v1521
      %v1600 = vmul.f32 %v1598, %v1523
      %v1601 = vmul.f32 %v1594, %v1527
      %v1602 = vmul.f32 %v1598, %v1529
      %v1603 = vadd.f32 %v1587, %v1599
      %v1604 = vadd.f32 %v1588, %v1600
      %v1605 = vadd.f32 %v1589, %v1601
      %v1606 = vadd.f32 %v1590, %v1602
      %v1607 = vmax.f32 %v1603, %v1605
      %v1608 = vrot.slane %v1607, 4
      %v1609 = vmax.f32 %v1607, %v1608
      %v1610 = vrot.slane %v1609, 2
      %v1611 = vmax.f32 %v1609, %v1610
      %v1612 = vrot.slane %v1611, 1
      %v1613 = vmax.f32 %v1611, %v1612
      %v1614 = vmax.f32 %v1604, %v1606
      %v1615 = vrot.slane %v1614, 4
      %v1616 = vmax.f32 %v1614, %v1615
      %v1617 = vrot.slane %v1616, 2
      %v1618 = vmax.f32 %v1616, %v1617
      %v1619 = vrot.slane %v1618, 1
      %v1620 = vmax.f32 %v1618, %v1619
      %v1621 = vsub.f32 %v1603, %v1613
      %v1622 = vsub.f32 %v1604, %v1620
      %v1623 = vsub.f32 %v1605, %v1613
      %v1624 = vsub.f32 %v1606, %v1620
      %v1625 = vmul.f32 %v1621, 1.442695
      %v1626 = vpow.pop %v1625
      %v1627 = vmul.f32 %v1622, 1.442695
      %v1628 = vpow.pop %v1627
      %v1629 = vmul.f32 %v1623, 1.442695
      %v1630 = vpow.pop %v1629
      %v1631 = vmul.f32 %v1624, 1.442695
      %v1632 = vpow.pop %v1631
      %v1633 = vadd.f32 %v1626, %v1630
      %v1634 = vrot.slane %v1633, 4
      %v1635 = vadd.f32 %v1633, %v1634
      %v1636 = vrot.slane %v1635, 2
      %v1637 = vadd.f32 %v1635, %v1636
      %v1638 = vrot.slane %v1637, 1
      %v1639 = vadd.f32 %v1637, %v1638
      %v1640 = vadd.f32 %v1628, %v1632
      %v1641 = vrot.slane %v1640, 4
      %v1642 = vadd.f32 %v1640, %v1641
      %v1643 = vrot.slane %v1642, 2
      %v1644 = vadd.f32 %v1642, %v1643
      %v1645 = vrot.slane %v1644, 1
      %v1646 = vadd.f32 %v1644, %v1645
      %v1647 = vrcp.pop %v1639
      %v1648 = vrcp.pop %v1646
      %v1649 = vmul.f32 %v1626, %v1647
      %v1650 = vmul.f32 %v1628, %v1648
      %v1651 = vmul.f32 %v1630, %v1647
      %v1652 = vmul.f32 %v1632, %v1648
      %v1653 = vmul.f32 %v1649, %v1533
      %v1654 = vmul.f32 %v1650, %v1535
      %v1655 = vmul.f32 %v1651, %v1539
      %v1656 = vmul.f32 %v1652, %v1541
      %v1657 = vadd.f32 %v1653, %v1655
      %v1658 = vrot.slane %v1657, 4
      %v1659 = vadd.f32 %v1657, %v1658
      %v1660 = vrot.slane %v1659, 2
      %v1661 = vadd.f32 %v1659, %v1660
      %v1662 = vrot.slane %v1661, 1
      %v1663 = vadd.f32 %v1661, %v1662
      %v1664 = vadd.f32 %v1654, %v1656
      %v1665 = vrot.slane %v1664, 4
      %v1666 = vadd.f32 %v1664, %v1665
      %v1667 = vrot.slane %v1666, 2
      %v1668 = vadd.f32 %v1666, %v1667
      %v1669 = vrot.slane %v1668, 1
      %v1670 = vadd.f32 %v1668, %v1669
      %v1671 = vmul.f32 %v1649, %v1545
      %v1672 = vmul.f32 %v1650, %v1547
      %v1673 = vmul.f32 %v1651, %v1551
      %v1674 = vmul.f32 %v1652, %v1553
      %v1675 = vadd.f32 %v1671, %v1673
      %v1676 = vrot.slane %v1675, 4
      %v1677 = vadd.f32 %v1675, %v1676
      %v1678 = vrot.slane %v1677, 2
      %v1679 = vadd.f32 %v1677, %v1678
      %v1680 = vrot.slane %v1679, 1
      %v1681 = vadd.f32 %v1679, %v1680
      %v1682 = vadd.f32 %v1672, %v1674
      %v1683 = vrot.slane %v1682, 4
      %v1684 = vadd.f32 %v1682, %v1683
      %v1685 = vrot.slane %v1684, 2
      %v1686 = vadd.f32 %v1684, %v1685
      %v1687 = vrot.slane %v1686, 1
      %v1688 = vadd.f32 %v1686, %v1687
      %v1689 = vmul.f32 %v1649, %v1557
      %v1690 = vmul.f32 %v1650, %v1559
      %v1691 = vmul.f32 %v1651, %v1563
      %v1692 = vmul.f32 %v1652, %v1565
      %v1693 = vadd.f32 %v1689, %v1691
      %v1694 = vrot.slane %v1693, 4
      %v1695 = vadd.f32 %v1693, %v1694
      %v1696 = vrot.slane %v1695, 2
      %v1697 = vadd.f32 %v1695, %v1696
      %v1698 = vrot.slane %v1697, 1
      %v1699 = vadd.f32 %v1697, %v1698
      %v1700 = vadd.f32 %v1690, %v1692
      %v1701 = vrot.slane %v1700, 4
      %v1702 = vadd.f32 %v1700, %v1701
      %v1703 = vrot.slane %v1702, 2
      %v1704 = vadd.f32 %v1702, %v1703
      %v1705 = vrot.slane %v1704, 1
      %v1706 = vadd.f32 %v1704, %v1705
      %v1707 = vmul.f32 %v1649, %v1569
      %v1708 = vmul.f32 %v1650, %v1571
      %v1709 = vmul.f32 %v1651, %v1575
      %v1710 = vmul.f32 %v1652, %v1577
      %v1711 = vadd.f32 %v1707, %v1709
      %v1712 = vrot.slane %v1711, 4
      %v1713 = vadd.f32 %v1711, %v1712
      %v1714 = vrot.slane %v1713, 2
      %v1715 = vadd.f32 %v1713, %v1714
      %v1716 = vrot.slane %v1715, 1
      %v1717 = vadd.f32 %v1715, %v1716
      %v1718 = vadd.f32 %v1708, %v1710
      %v1719 = vrot.slane %v1718, 4
      %v1720 = vadd.f32 %v1718, %v1719
      %v1721 = vrot.slane %v1720, 2
      %v1722 = vadd.f32 %v1720, %v1721
      %v1723 = vrot.slane %v1722, 1
      %v1724 = vadd.f32 %v1722, %v1723
      %v1725 = vsel %vm1015, %v1663, %v1681
      %v1726 = vsel %vm1015, %v1670, %v1688
      %v1727 = vsel %vm1018, %v1725, %v1699
      %v1728 = vsel %vm1018, %v1726, %v1706
      %v1729 = vsel %vm1021, %v1727, %v1717
      %v1730 = vsel %vm1021, %v1728, %v1724
      %v1731 = vld [vmem:[%s4 + $0x40] sm:$0xf]
      %v1732 = vld [vmem:[%s4 + $0x48] sm:$0xf]
      %v1733 = vadd.f32 %v1729, %v1731
      %v1734 = vadd.f32 %v1730, %v1732
      %v1735 = vld [vmem:[%s3 + $0x8] sm:$0xff]
      %v1736 = vmax.f32 %v1733, 0.0
      %v1737 = vmax.f32 %v1734, 0.0
      %v1738 = vld [vmem:[%s4 + $0x50] sm:$0xff]
      %v1739 = vld [vmem:[%s4 + $0x58] sm:$0xff]
      %v1741 = vsel %vm328, %v1735, 0
      %v1744 = vsel %vm368, %v1736, 0
      %v1747 = vsel %vm368, %v1737, 0
      %1749 = vmatprep.subr.mxu0 %v1747
      %1750 = vmatpush1.msra.mxu0 %v1744
      %1751 = vmatprep.subr.mxu0 0.0
      %1752 = vmatpush1.msra.mxu0 0.0
      %1753 = vmatprep.subr.mxu0 0.0
      %1754 = vmatpush1.msra.mxu0 0.0
      %1755 = vmatprep.subr.mxu0 0.0
      %1756 = vmatpush1.msra.mxu0 0.0
      %1757 = vmatprep.subr.mxu0 0.0
      %1758 = vmatpush1.msra.mxu0 0.0
      %1759 = vmatprep.subr.mxu0 0.0
      %1760 = vmatpush1.msra.mxu0 0.0
      %1761 = vmatprep.subr.mxu0 0.0
      %1762 = vmatpush1.msra.mxu0 0.0
      %1763 = vmatprep.subr.mxu0 0.0
      %1764 = vmatpush1.msra.mxu0 0.0
      %1765 = vmatprep.subr.mxu0 0.0
      %1766 = vmatpush1.msra.mxu0 0.0
      %1767 = vmatprep.subr.mxu0 0.0
      %1768 = vmatpush1.msra.mxu0 0.0
      %1769 = vmatprep.subr.mxu0 0.0
      %1770 = vmatpush1.msra.mxu0 0.0
      %1771 = vmatprep.subr.mxu0 0.0
      %1772 = vmatpush1.msra.mxu0 0.0
      %1773 = vmatprep.subr.mxu0 0.0
      %1774 = vmatpush1.msra.mxu0 0.0
      %1775 = vmatprep.subr.mxu0 0.0
      %1776 = vmatpush1.msra.mxu0 0.0
      %1777 = vmatprep.subr.mxu0 0.0
      %1778 = vmatpush1.msra.mxu0 0.0
      %1779 = vmatprep.subr.mxu0 0.0
      %1780 = vmatpush1.msra.mxu0 0.0
      %1781 = vmatprep.subr.mxu0 0.0
      %1782 = vmatpush1.msra.mxu0 0.0
      %1783 = vmatprep.subr.mxu0 0.0
      %1784 = vmatpush1.msra.mxu0 0.0
      %1785 = vmatprep.subr.mxu0 0.0
      %1786 = vmatpush1.msra.mxu0 0.0
      %1787 = vmatprep.subr.mxu0 0.0
      %1788 = vmatpush1.msra.mxu0 0.0
      %1789 = vmatprep.subr.mxu0 0.0
      %1790 = vmatpush1.msra.mxu0 0.0
      %1791 = vmatprep.subr.mxu0 0.0
      %1792 = vmatpush1.msra.mxu0 0.0
      %1793 = vmatprep.subr.mxu0 0.0
      %1794 = vmatpush1.msra.mxu0 0.0
      %1795 = vmatprep.subr.mxu0 0.0
      %1796 = vmatpush1.msra.mxu0 0.0
      %1797 = vmatprep.subr.mxu0 0.0
      %1798 = vmatpush1.msra.mxu0 0.0
      %1799 = vmatprep.subr.mxu0 0.0
      %1800 = vmatpush1.msra.mxu0 0.0
      %1801 = vmatprep.subr.mxu0 0.0
      %1802 = vmatpush1.msra.mxu0 0.0
      %1803 = vmatprep.subr.mxu0 0.0
      %1804 = vmatpush1.msra.mxu0 0.0
      %1805 = vmatprep.subr.mxu0 0.0
      %1806 = vmatpush1.msra.mxu0 0.0
      %1807 = vmatprep.subr.mxu0 0.0
      %1808 = vmatpush1.msra.mxu0 0.0
      %1809 = vmatprep.subr.mxu0 0.0
      %1810 = vmatpush1.msra.mxu0 0.0
      %1811 = vmatprep.subr.mxu0 0.0
      %1812 = vmatpush1.msra.mxu0 0.0
      %1813 = vmatprep.mubr.f32.mxu0 0.0
      %1814 = vmatmul.mubr.f32.gmra.mrb[0].mxu0 %v1741
      %v1815 = vpop.f32.mrb[0].mxu0
      %v1816 = vadd.f32 %v1738, %v1815
      %v1817 = vpop.f32.mrb[0].mxu0
      %v1818 = vadd.f32 %v1739, %v1817
      %1819 = vdwg.mxu0
      %v1820 = vadd.f32 %v1816, %v225
      %v1821 = vadd.f32 %v1818, %v226
      %v1822 = vmax.f32 %v1820, 0.0
      %v1823 = vmax.f32 %v1821, 0.0
      %1824 = vst [vmem:[%s224] sm:$0xff] %v1822
      %1825 = vst [vmem:[%s224 + $0x8] sm:$0xff] %v1823
      %p1826 = scmp.lt.s32.totalorder %s16, 1
      %s1827 = scalar_select %p1826, %s16, 1
      %s1828 = smul.addr %s1827, 2
      %s1829 = smul.addr %s1828, 8
      %s1830 = scalar_lea.vmem %s5, %s1829
      // Predicated region
      $region41: #{axial_block_forward.1} parent=39 // pred_check
        %p1831 = pneg %p144
      $region42: #{axial_block_forward.1} parent=39 // pred_check_branch
        %1833 = sbr.rel (%p1831) target = $region44
      $region43: #{axial_block_forward.1} parent=39 // pred_region
        _
      $region44: #{axial_block_forward.1} parent=39 // pred_fallthru
        _
    $region40: #{axial_block_forward.1} parent=5 // pred_fallthru
      _
    %p1834 = scmp.le.s32.totalorder 2, %s11
    // Predicated region
    $region45: #{axial_block_forward.1} parent=5 // pred_check
      %p1835 = pneg %p1834
    $region46: #{axial_block_forward.1} parent=5 // pred_check_branch
      %1837 = sbr.rel (%p1835) target = $region48
    $region47: #{axial_block_forward.1} parent=5 // pred_region
      %s1838 = ssub.s32 %s11, 2
      // Predicated region
      $region49: #{axial_block_forward.1} parent=47 // pred_check
        %p1839 = pneg %p150
      $region50: #{axial_block_forward.1} parent=47 // pred_check_branch
        %1841 = sbr.rel (%p1839) target = $region52
      $region51: #{axial_block_forward.1} parent=47 // pred_region
        %p1842 = scmp.lt.s32.totalorder %s17, 1
        %s1843 = scalar_select %p1842, %s17, 1
        %s1844 = smul.addr %s1843, 2
        %s1845 = smul.addr %s1844, 8
        %s1846 = scalar_lea.vmem %s5, %s1845
      $region52: #{axial_block_forward.1} parent=47 // pred_fallthru
        _
    $region48: #{axial_block_forward.1} parent=5 // pred_fallthru
      _
  $region6: #{axial_block_forward.1} parent=0 // loop_footer
    %s15 = sadd.s32 1, %s11
  $region7: #{axial_block_forward.1} parent=0 // loop_footer_branch
    %10 = sbr.rel target = $region3
  $region8: #{axial_block_forward.1} parent=0 // loop_exit
    _

</llo_original>
